<compile_context>
chip_gen: v7x
topology: tpu7x:2x2x1
jax: 0.10.0
libtpu: 0.0.40
codegen_flags: <defaults>
</compile_context>

<pallas_src>
import functools

import jax
import jax.numpy as jnp
from jax.experimental import pallas as pl
from jax.experimental.pallas import tpu as pltpu  # noqa: F401  (kept for TPU memory-space use if needed)


# ----------------------------------------------------------------------------
# The fused forward kernel (single invocation, whole arrays resident in VMEM)
# ----------------------------------------------------------------------------

def _fused_vae_kernel(oh_ref, lmask_ref,
                      ew1_ref, eb1_ref, ew2_ref, eb2_ref,
                      ewmu_ref, ebmu_ref, ewls_ref, ebls_ref,
                      muW1_ref, lsW1_ref, epsW1_ref,
                      mub1_ref, lsb1_ref, epsb1_ref,
                      muW2_ref, lsW2_ref, epsW2_ref,
                      mub2_ref, lsb2_ref, epsb2_ref,
                      muW3_ref, lsW3_ref, epsW3_ref,
                      mub3_ref, lsb3_ref, epsb3_ref,
                      epsz_ref,
                      logp_ref, stats_ref,
                      *, B, L, Apad):
    f32 = jnp.float32
    bf16 = jnp.bfloat16

    oh = oh_ref[...]                        # [B, L*Apad] bf16 one-hot (padded lanes 0)
    oh_f = oh.astype(f32)

    # ---------------- encoder: ONE fused matmul over the padded one-hot --------------
    h = jnp.maximum(
        jnp.dot(oh, ew1_ref[...], preferred_element_type=f32) + eb1_ref[...], 0.0)
    h2 = jnp.maximum(
        jnp.dot(h.astype(bf16), ew2_ref[...], preferred_element_type=f32)
        + eb2_ref[...], 0.0)
    h2b = h2.astype(bf16)
    mu = jnp.dot(h2b, ewmu_ref[...], preferred_element_type=f32) + ebmu_ref[...] + 1e-6
    logvar = (jnp.dot(h2b, ewls_ref[...], preferred_element_type=f32)
              + ebls_ref[...] + 1e-6)

    # per-sample KL( N(mu, exp(0.5*logvar)) || N(0,1) )
    kld_per = jnp.sum(-0.5 * logvar + 0.5 * (jnp.exp(logvar) + mu * mu) - 0.5,
                      axis=-1, keepdims=True)                       # [B, 1]

    # reparameterized z (std = exp(0.5*logvar), matching Normal(mu, logvar.mul(.5).exp()))
    z = mu + epsz_ref[...] * jnp.exp(0.5 * logvar)

    # ---------------- Bayesian decoder weight sampling (std = exp(logsigma)) ---------
    def sample(mu_r, ls_r, eps_r):
        return mu_r[...] + eps_r[...] * jnp.exp(ls_r[...])

    W1 = sample(muW1_ref, lsW1_ref, epsW1_ref).astype(bf16)        # [Z,  D1]
    b1 = sample(mub1_ref, lsb1_ref, epsb1_ref)                     # [1,  D1]
    W2 = sample(muW2_ref, lsW2_ref, epsW2_ref).astype(bf16)        # [D1, D2]
    b2 = sample(mub2_ref, lsb2_ref, epsb2_ref)                     # [1,  D2]
    W3 = sample(muW3_ref, lsW3_ref, epsW3_ref).astype(bf16)        # [D2, L*Apad]
    b3 = sample(mub3_ref, lsb3_ref, epsb3_ref)                     # [1,  L*Apad]

    # ---------------- decoder on stacked [z ; mu]: loss half + metrics half ----------
    # TODO(synk): the source resamples decoder weights for the accuracy decode; the same
    # weight sample is reused for both halves here (logsigma init is -10, difference is
    # negligible and the merge was reviewer-endorsed).
    zin = jnp.concatenate([z, mu], axis=0).astype(bf16)            # [2B, Z]
    hd1 = jnp.maximum(jnp.dot(zin, W1, preferred_element_type=f32) + b1, 0.0)
    hd2 = jax.nn.sigmoid(jnp.dot(hd1.astype(bf16), W2, preferred_element_type=f32) + b2)
    # ONE fused logits matmul; lmask knocks padded alphabet lanes down to ~-1e30.
    lo = (jnp.dot(hd2.astype(bf16), W3, preferred_element_type=f32)
          + b3 + lmask_ref[...])                                   # [2B, L*Apad]

    lo_z = lo[:B, :]                                               # loss half (z sample)
    lo_m = lo[B:, :]                                               # metrics half (mu)

    # cross-entropy target term over ALL lanes at once (padded one-hot lanes are 0)
    tgt_z_tot = jnp.sum(oh_f * lo_z, axis=-1, keepdims=True)       # [B, 1]

    lse_sum = jnp.zeros((B, 1), f32)
    ncorrect = jnp.zeros((B, 1), f32)
    logp_segs = []
    for l in range(L):                                             # per-position softmax
        s0 = l * Apad
        seg_z = lo_z[:, s0:s0 + Apad]                              # [B, Apad]
        seg_m = lo_m[:, s0:s0 + Apad]
        oh_seg = oh_f[:, s0:s0 + Apad]

        m_z = jnp.max(seg_z, axis=-1, keepdims=True)
        lse_z = jnp.log(jnp.sum(jnp.exp(seg_z - m_z), axis=-1, keepdims=True)) + m_z
        logp_segs.append(seg_z - lse_z)
        lse_sum = lse_sum + lse_z

        # TODO(synk): ties with the max logit count as correct (torch argmax equality
        # would only count a tie if the target is the first argmax) — negligible.
        m_m = jnp.max(seg_m, axis=-1, keepdims=True)
        tgt_m = jnp.sum(oh_seg * seg_m, axis=-1, keepdims=True)
        ncorrect = ncorrect + (tgt_m >= m_m).astype(f32)

    # single lane-dense store of the log-probs (wrapper slices :A per position)
    logp_ref[...] = jnp.concatenate(logp_segs, axis=-1)            # [B, L*Apad]

    recon_per = lse_sum - tgt_z_tot                                # [B, 1]

    # ---------------- global Bayesian parameter KLD (global_parameter_kld1) ----------
    # (padded W3/b3 entries have mu=0, logsigma=0 -> exactly zero contribution)
    def pk(mu_r, ls_r):
        m, ls = mu_r[...], ls_r[...]
        return jnp.sum(-0.5 - 0.5 * ls + 0.5 * m * m + 0.5 * jnp.exp(ls))

    pkld = (pk(muW1_ref, lsW1_ref) + pk(mub1_ref, lsb1_ref)
            + pk(muW2_ref, lsW2_ref) + pk(mub2_ref, lsb2_ref)
            + pk(muW3_ref, lsW3_ref) + pk(mub3_ref, lsb3_ref))

    # ---------------- lane-dense stats slab: scalars in row 0, lanes 0..3 ------------
    rowi = jax.lax.broadcasted_iota(jnp.int32, (8, 128), 0)
    lanei = jax.lax.broadcasted_iota(jnp.int32, (8, 128), 1)
    stats = jnp.zeros((8, 128), f32)
    for idx, val in enumerate((jnp.sum(recon_per), jnp.sum(kld_per),
                               jnp.sum(ncorrect), pkld)):
        stats = jnp.where((rowi == 0) & (lanei == idx), val, stats)
    stats_ref[...] = stats


# ----------------------------------------------------------------------------
# pallas_call wrapper (no grid: single invocation, every array fits VMEM easily)
# ----------------------------------------------------------------------------

def run_fused_vae(args, *, B, L, Apad):
    kernel = functools.partial(_fused_vae_kernel, B=B, L=L, Apad=Apad)
    out_shape = (jax.ShapeDtypeStruct((B, L * Apad), jnp.float32),
                 jax.ShapeDtypeStruct((8, 128), jnp.float32))
    return pl.pallas_call(kernel, out_shape=out_shape)(*args)


# ----------------------------------------------------------------------------
# Parameter init (deterministic, mirrors the module's __init__)
# ----------------------------------------------------------------------------

def xavier_normal(key, shape):
    fan_in, fan_out = shape
    std = (2.0 / (fan_in + fan_out)) ** 0.5
    return std * jax.random.normal(key, shape, dtype=jnp.float32)


def init_params(key, layer_sizes, alphabet_size):
    L = layer_sizes[0] // alphabet_size
    z_dim = layer_sizes[3]
    W3_out = alphabet_size * L
    ks = jax.random.split(key, 7)
    p = {}
    # encoder (weights stored [in, out] = transpose of nn.Linear)
    p["enc_w1"] = xavier_normal(ks[0], (layer_sizes[0], layer_sizes[1]))
    p["enc_b1"] = jnp.full((1, layer_sizes[1]), 0.1, jnp.float32)
    p["enc_w2"] = xavier_normal(ks[1], (layer_sizes[1], layer_sizes[2]))
    p["enc_b2"] = jnp.full((1, layer_sizes[2]), 0.1, jnp.float32)
    p["enc_wmu"] = xavier_normal(ks[2], (layer_sizes[2], z_dim))
    p["enc_bmu"] = jnp.full((1, z_dim), 0.1, jnp.float32)
    p["enc_wls"] = xavier_normal(ks[3], (layer_sizes[2], z_dim))
    p["enc_bls"] = jnp.full((1, z_dim), -10.0, jnp.float32)
    # Bayesian decoder parameter distributions
    p["mu_W1"] = xavier_normal(ks[4], (z_dim, layer_sizes[4]))
    p["ls_W1"] = jnp.full((z_dim, layer_sizes[4]), -10.0, jnp.float32)
    p["mu_b1"] = jnp.full((1, layer_sizes[4]), 0.1, jnp.float32)
    p["ls_b1"] = jnp.full((1, layer_sizes[4]), -10.0, jnp.float32)
    p["mu_W2"] = xavier_normal(ks[5], (layer_sizes[4], layer_sizes[5]))
    p["ls_W2"] = jnp.full((layer_sizes[4], layer_sizes[5]), -10.0, jnp.float32)
    p["mu_b2"] = jnp.full((1, layer_sizes[5]), 0.1, jnp.float32)
    p["ls_b2"] = jnp.full((1, layer_sizes[5]), -10.0, jnp.float32)
    p["mu_W3"] = xavier_normal(ks[6], (layer_sizes[5], W3_out))
    p["ls_W3"] = jnp.full((layer_sizes[5], W3_out), -10.0, jnp.float32)
    p["mu_b3"] = jnp.full((1, W3_out), 0.1, jnp.float32)
    p["ls_b3"] = jnp.full((1, W3_out), -10.0, jnp.float32)
    return p


# ----------------------------------------------------------------------------
# Forward pass (mirrors VAE_bayes.forward -> vae_loss -> encoder/decoder/losses)
# ----------------------------------------------------------------------------

def vae_forward(params, x, neff, labels, weights, key, alphabet_size, z_samples=1):
    assert z_samples == 1, "kernel implements the default z_samples=1 path"
    del labels, weights            # unused for defaults (labels unused, rws=False)
    f32, bf16 = jnp.float32, jnp.bfloat16
    B, L = x.shape
    A = alphabet_size
    Apad = int(pl.next_power_of_2(max(A, 8)))        # 20 -> 32 (L*Apad = 256 lanes)
    LAp = L * Apad
    H1 = params["enc_w1"].shape[1]
    D2 = params["mu_W2"].shape[1]
    Z = params["mu_W1"].shape[0]

    # lane-padded one-hot, flattened position-major: index = l*Apad + a
    oh = jax.nn.one_hot(x, A, dtype=f32)                                  # [B, L, A]
    oh = jnp.pad(oh, ((0, 0), (0, 0), (0, Apad - A)))
    oh = oh.reshape(B, LAp).astype(bf16)

    # additive mask for padded alphabet lanes (0 on valid lanes, -1e30 on padding)
    lmask = jnp.pad(jnp.zeros((1, 1, A), f32), ((0, 0), (0, 0), (0, Apad - A)),
                    constant_values=-1e30)
    lmask = jnp.tile(lmask, (1, L, 1)).reshape(1, LAp)

    # encoder weights (bf16); enc_w1 rows padded to match the padded one-hot layout
    ew1 = jnp.pad(params["enc_w1"].reshape(L, A, H1),
                  ((0, 0), (0, Apad - A), (0, 0))).reshape(LAp, H1).astype(bf16)
    ew2 = params["enc_w2"].astype(bf16)
    ewmu = params["enc_wmu"].astype(bf16)
    ewls = params["enc_wls"].astype(bf16)

    # decoder W3/b3 distribution params in natural [D2, L*Apad] layout
    # (zero mu / zero logsigma padding -> zero contribution to the parameter KLD)
    def pad_cols(w, lead):
        return jnp.pad(w.reshape(lead, L, A),
                       ((0, 0), (0, 0), (0, Apad - A))).reshape(lead, LAp)

    mu_W3 = pad_cols(params["mu_W3"], D2)
    ls_W3 = pad_cols(params["ls_W3"], D2)
    mu_b3 = pad_cols(params["mu_b3"], 1)
    ls_b3 = pad_cols(params["ls_b3"], 1)

    # Gaussian noise for Bayesian weight samples and z reparameterization
    # (host-side jax.random replaces the in-kernel TPU PRNG: no prng_seed lowering issues)
    kW1, kb1, kW2, kb2, kW3, kb3, kz = jax.random.split(key, 7)
    eps_W1 = jax.random.normal(kW1, params["mu_W1"].shape, f32)
    eps_b1 = jax.random.normal(kb1, params["mu_b1"].shape, f32)
    eps_W2 = jax.random.normal(kW2, params["mu_W2"].shape, f32)
    eps_b2 = jax.random.normal(kb2, params["mu_b2"].shape, f32)
    eps_W3 = jax.random.normal(kW3, (D2, LAp), f32)
    eps_b3 = jax.random.normal(kb3, (1, LAp), f32)
    eps_z = jax.random.normal(kz, (B, Z), f32)

    args = (oh, lmask,
            ew1, params["enc_b1"], ew2, params["enc_b2"],
            ewmu, params["enc_bmu"], ewls, params["enc_bls"],
            params["mu_W1"], params["ls_W1"], eps_W1,
            params["mu_b1"], params["ls_b1"], eps_b1,
            params["mu_W2"], params["ls_W2"], eps_W2,
            params["mu_b2"], params["ls_b2"], eps_b2,
            mu_W3, ls_W3, eps_W3,
            mu_b3, ls_b3, eps_b3,
            eps_z)

    logp_pad, stats = run_fused_vae(args, B=B, L=L, Apad=Apad)

    recon_sum, kld_sum, correct, pkld_raw = (stats[0, 0], stats[0, 1],
                                             stats[0, 2], stats[0, 3])

    nll_loss = recon_sum / B
    kld_loss = kld_sum / B
    recon_kld_loss = (recon_sum + kld_sum) / B
    param_kld = pkld_raw / neff
    total_loss = recon_kld_loss + param_kld
    acc = correct / (B * L)

    # px_z is Categorical(logits=h3); returning its log-probs (same distribution).
    logp3 = logp_pad.reshape(B, L, Apad)[:, :, :A]

    # TODO(synk): smooth_one_hot is undefined in the source module; a plain one-hot
    # target (zero smoothing) is used for the cross entropy.
    # TODO(synk): the original module returns mse_auxiliary_loss which is undefined
    # when auxiliary_ELBO_loss=False; 0.0 is returned for that slot.
    aux_loss = jnp.float32(0.0)

    metrics = {
        "accuracy": acc,
        "nll_loss": nll_loss,
        "kld_loss": kld_loss,
        "param_kld": param_kld,
        "aux_loss": aux_loss,
    }
    return total_loss, metrics, logp3, aux_loss


# ----------------------------------------------------------------------------
# Main
# ----------------------------------------------------------------------------

if __name__ == "__main__":
    alphabet_size = 20                  # protein alphabet
    seq_len = 8
    layer_sizes = [seq_len * alphabet_size, 64, 64, 16, 64, 64]
    batch = 16

    key = jax.random.PRNGKey(0)
    pkey, xkey, fkey = jax.random.split(key, 3)

    params = init_params(pkey, layer_sizes, alphabet_size)
    x = jax.random.randint(xkey, (batch, seq_len), 0, alphabet_size, dtype=jnp.int32)
    neff = jnp.float32(100.0)
    weights = jnp.ones((batch,), jnp.float32)

    fwd = jax.jit(vae_forward, static_argnums=(6, 7))
    total_loss, metrics, px_z_logp, aux_loss = fwd(
        params, x, neff, None, weights, fkey, alphabet_size, 1)

    jax.block_until_ready((total_loss, metrics, px_z_logp, aux_loss))
    assert bool(jnp.isfinite(total_loss)), "non-finite total loss"
    print("KERNEL_OK")
</pallas_src>

<mosaic_0001>
module attributes {stable_mosaic.version = 11 : i64} {
  func.func @_fused_vae_kernel(%arg0: memref<16x256xbf16, #tpu.memory_space<vmem>>, %arg1: memref<1x256xf32, #tpu.memory_space<vmem>>, %arg2: memref<256x64xbf16, #tpu.memory_space<vmem>>, %arg3: memref<1x64xf32, #tpu.memory_space<vmem>>, %arg4: memref<64x64xbf16, #tpu.memory_space<vmem>>, %arg5: memref<1x64xf32, #tpu.memory_space<vmem>>, %arg6: memref<64x16xbf16, #tpu.memory_space<vmem>>, %arg7: memref<1x16xf32, #tpu.memory_space<vmem>>, %arg8: memref<64x16xbf16, #tpu.memory_space<vmem>>, %arg9: memref<1x16xf32, #tpu.memory_space<vmem>>, %arg10: memref<16x64xf32, #tpu.memory_space<vmem>>, %arg11: memref<16x64xf32, #tpu.memory_space<vmem>>, %arg12: memref<16x64xf32, #tpu.memory_space<vmem>>, %arg13: memref<1x64xf32, #tpu.memory_space<vmem>>, %arg14: memref<1x64xf32, #tpu.memory_space<vmem>>, %arg15: memref<1x64xf32, #tpu.memory_space<vmem>>, %arg16: memref<64x64xf32, #tpu.memory_space<vmem>>, %arg17: memref<64x64xf32, #tpu.memory_space<vmem>>, %arg18: memref<64x64xf32, #tpu.memory_space<vmem>>, %arg19: memref<1x64xf32, #tpu.memory_space<vmem>>, %arg20: memref<1x64xf32, #tpu.memory_space<vmem>>, %arg21: memref<1x64xf32, #tpu.memory_space<vmem>>, %arg22: memref<64x256xf32, #tpu.memory_space<vmem>>, %arg23: memref<64x256xf32, #tpu.memory_space<vmem>>, %arg24: memref<64x256xf32, #tpu.memory_space<vmem>>, %arg25: memref<1x256xf32, #tpu.memory_space<vmem>>, %arg26: memref<1x256xf32, #tpu.memory_space<vmem>>, %arg27: memref<1x256xf32, #tpu.memory_space<vmem>>, %arg28: memref<16x16xf32, #tpu.memory_space<vmem>>, %arg29: memref<16x256xf32, #tpu.memory_space<vmem>>, %arg30: memref<8x128xf32, #tpu.memory_space<vmem>>) attributes {dimension_semantics = [], scalar_prefetch = 0 : i64, scratch_operands = 0 : i64, tpu.core_type = #tpu.core_type<tc>} {
    %c0 = arith.constant 0 : index
    %c0_0 = arith.constant 0 : index
    %0 = vector.load %arg0[%c0, %c0_0] : memref<16x256xbf16, #tpu.memory_space<vmem>>, vector<16x256xbf16>
    %1 = arith.extf %0 : vector<16x256xbf16> to vector<16x256xf32>
    %c0_1 = arith.constant 0 : index
    %c0_2 = arith.constant 0 : index
    %2 = vector.load %arg2[%c0_1, %c0_2] : memref<256x64xbf16, #tpu.memory_space<vmem>>, vector<256x64xbf16>
    %cst = arith.constant dense<0.000000e+00> : vector<16x64xf32>
    %3 = tpu.matmul %0, %2, %cst {dimension_numbers = #tpu.dot_dimension_numbers<[1], [0], [0], [1], [0, 0, 1, 1], [], []>} : vector<16x256xbf16>, vector<256x64xbf16>, vector<16x64xf32> -> vector<16x64xf32>
    %c0_3 = arith.constant 0 : index
    %c0_4 = arith.constant 0 : index
    %4 = vector.load %arg3[%c0_3, %c0_4] : memref<1x64xf32, #tpu.memory_space<vmem>>, vector<1x64xf32>
    %5 = vector.broadcast %4 : vector<1x64xf32> to vector<16x64xf32>
    %6 = arith.addf %3, %5 : vector<16x64xf32>
    %cst_5 = arith.constant 0.000000e+00 : f32
    %7 = vector.broadcast %cst_5 : f32 to vector<16x64xf32>
    %8 = arith.maximumf %6, %7 : vector<16x64xf32>
    %9 = arith.truncf %8 : vector<16x64xf32> to vector<16x64xbf16>
    %c0_6 = arith.constant 0 : index
    %c0_7 = arith.constant 0 : index
    %10 = vector.load %arg4[%c0_6, %c0_7] : memref<64x64xbf16, #tpu.memory_space<vmem>>, vector<64x64xbf16>
    %cst_8 = arith.constant dense<0.000000e+00> : vector<16x64xf32>
    %11 = tpu.matmul %9, %10, %cst_8 {dimension_numbers = #tpu.dot_dimension_numbers<[1], [0], [0], [1], [0, 0, 1, 1], [], []>} : vector<16x64xbf16>, vector<64x64xbf16>, vector<16x64xf32> -> vector<16x64xf32>
    %c0_9 = arith.constant 0 : index
    %c0_10 = arith.constant 0 : index
    %12 = vector.load %arg5[%c0_9, %c0_10] : memref<1x64xf32, #tpu.memory_space<vmem>>, vector<1x64xf32>
    %13 = vector.broadcast %12 : vector<1x64xf32> to vector<16x64xf32>
    %14 = arith.addf %11, %13 : vector<16x64xf32>
    %cst_11 = arith.constant 0.000000e+00 : f32
    %15 = vector.broadcast %cst_11 : f32 to vector<16x64xf32>
    %16 = arith.maximumf %14, %15 : vector<16x64xf32>
    %17 = arith.truncf %16 : vector<16x64xf32> to vector<16x64xbf16>
    %c0_12 = arith.constant 0 : index
    %c0_13 = arith.constant 0 : index
    %18 = vector.load %arg6[%c0_12, %c0_13] : memref<64x16xbf16, #tpu.memory_space<vmem>>, vector<64x16xbf16>
    %cst_14 = arith.constant dense<0.000000e+00> : vector<16x16xf32>
    %19 = tpu.matmul %17, %18, %cst_14 {dimension_numbers = #tpu.dot_dimension_numbers<[1], [0], [0], [1], [0, 0, 1, 1], [], []>} : vector<16x64xbf16>, vector<64x16xbf16>, vector<16x16xf32> -> vector<16x16xf32>
    %c0_15 = arith.constant 0 : index
    %c0_16 = arith.constant 0 : index
    %20 = vector.load %arg7[%c0_15, %c0_16] : memref<1x16xf32, #tpu.memory_space<vmem>>, vector<1x16xf32>
    %21 = vector.broadcast %20 : vector<1x16xf32> to vector<16x16xf32>
    %22 = arith.addf %19, %21 : vector<16x16xf32>
    %cst_17 = arith.constant 9.99999997E-7 : f32
    %23 = vector.broadcast %cst_17 : f32 to vector<16x16xf32>
    %24 = arith.addf %22, %23 : vector<16x16xf32>
    %c0_18 = arith.constant 0 : index
    %c0_19 = arith.constant 0 : index
    %25 = vector.load %arg8[%c0_18, %c0_19] : memref<64x16xbf16, #tpu.memory_space<vmem>>, vector<64x16xbf16>
    %cst_20 = arith.constant dense<0.000000e+00> : vector<16x16xf32>
    %26 = tpu.matmul %17, %25, %cst_20 {dimension_numbers = #tpu.dot_dimension_numbers<[1], [0], [0], [1], [0, 0, 1, 1], [], []>} : vector<16x64xbf16>, vector<64x16xbf16>, vector<16x16xf32> -> vector<16x16xf32>
    %c0_21 = arith.constant 0 : index
    %c0_22 = arith.constant 0 : index
    %27 = vector.load %arg9[%c0_21, %c0_22] : memref<1x16xf32, #tpu.memory_space<vmem>>, vector<1x16xf32>
    %28 = vector.broadcast %27 : vector<1x16xf32> to vector<16x16xf32>
    %29 = arith.addf %26, %28 : vector<16x16xf32>
    %cst_23 = arith.constant 9.99999997E-7 : f32
    %30 = vector.broadcast %cst_23 : f32 to vector<16x16xf32>
    %31 = arith.addf %29, %30 : vector<16x16xf32>
    %cst_24 = arith.constant -5.000000e-01 : f32
    %32 = vector.broadcast %cst_24 : f32 to vector<16x16xf32>
    %33 = arith.mulf %32, %31 : vector<16x16xf32>
    %34 = math.exp %31 : vector<16x16xf32>
    %35 = arith.mulf %24, %24 : vector<16x16xf32>
    %36 = arith.addf %34, %35 : vector<16x16xf32>
    %cst_25 = arith.constant 5.000000e-01 : f32
    %37 = vector.broadcast %cst_25 : f32 to vector<16x16xf32>
    %38 = arith.mulf %37, %36 : vector<16x16xf32>
    %39 = arith.addf %33, %38 : vector<16x16xf32>
    %cst_26 = arith.constant 5.000000e-01 : f32
    %40 = vector.broadcast %cst_26 : f32 to vector<16x16xf32>
    %41 = arith.subf %39, %40 : vector<16x16xf32>
    %cst_27 = arith.constant dense<0.000000e+00> : vector<16xf32>
    %42 = vector.multi_reduction <add>, %41, %cst_27 [1] : vector<16x16xf32> to vector<16xf32>
    %43 = vector.shape_cast %42 : vector<16xf32> to vector<16x1xf32>
    %c0_28 = arith.constant 0 : index
    %c0_29 = arith.constant 0 : index
    %44 = vector.load %arg28[%c0_28, %c0_29] : memref<16x16xf32, #tpu.memory_space<vmem>>, vector<16x16xf32>
    %cst_30 = arith.constant 5.000000e-01 : f32
    %45 = vector.broadcast %cst_30 : f32 to vector<16x16xf32>
    %46 = arith.mulf %45, %31 : vector<16x16xf32>
    %47 = math.exp %46 : vector<16x16xf32>
    %48 = arith.mulf %44, %47 : vector<16x16xf32>
    %49 = arith.addf %24, %48 : vector<16x16xf32>
    %c0_31 = arith.constant 0 : index
    %c0_32 = arith.constant 0 : index
    %50 = vector.load %arg10[%c0_31, %c0_32] : memref<16x64xf32, #tpu.memory_space<vmem>>, vector<16x64xf32>
    %c0_33 = arith.constant 0 : index
    %c0_34 = arith.constant 0 : index
    %51 = vector.load %arg12[%c0_33, %c0_34] : memref<16x64xf32, #tpu.memory_space<vmem>>, vector<16x64xf32>
    %c0_35 = arith.constant 0 : index
    %c0_36 = arith.constant 0 : index
    %52 = vector.load %arg11[%c0_35, %c0_36] : memref<16x64xf32, #tpu.memory_space<vmem>>, vector<16x64xf32>
    %53 = math.exp %52 : vector<16x64xf32>
    %54 = arith.mulf %51, %53 : vector<16x64xf32>
    %55 = arith.addf %50, %54 : vector<16x64xf32>
    %56 = arith.truncf %55 : vector<16x64xf32> to vector<16x64xbf16>
    %c0_37 = arith.constant 0 : index
    %c0_38 = arith.constant 0 : index
    %57 = vector.load %arg13[%c0_37, %c0_38] : memref<1x64xf32, #tpu.memory_space<vmem>>, vector<1x64xf32>
    %c0_39 = arith.constant 0 : index
    %c0_40 = arith.constant 0 : index
    %58 = vector.load %arg15[%c0_39, %c0_40] : memref<1x64xf32, #tpu.memory_space<vmem>>, vector<1x64xf32>
    %c0_41 = arith.constant 0 : index
    %c0_42 = arith.constant 0 : index
    %59 = vector.load %arg14[%c0_41, %c0_42] : memref<1x64xf32, #tpu.memory_space<vmem>>, vector<1x64xf32>
    %60 = math.exp %59 : vector<1x64xf32>
    %61 = arith.mulf %58, %60 : vector<1x64xf32>
    %62 = arith.addf %57, %61 : vector<1x64xf32>
    %c0_43 = arith.constant 0 : index
    %c0_44 = arith.constant 0 : index
    %63 = vector.load %arg16[%c0_43, %c0_44] : memref<64x64xf32, #tpu.memory_space<vmem>>, vector<64x64xf32>
    %c0_45 = arith.constant 0 : index
    %c0_46 = arith.constant 0 : index
    %64 = vector.load %arg18[%c0_45, %c0_46] : memref<64x64xf32, #tpu.memory_space<vmem>>, vector<64x64xf32>
    %c0_47 = arith.constant 0 : index
    %c0_48 = arith.constant 0 : index
    %65 = vector.load %arg17[%c0_47, %c0_48] : memref<64x64xf32, #tpu.memory_space<vmem>>, vector<64x64xf32>
    %66 = math.exp %65 : vector<64x64xf32>
    %67 = arith.mulf %64, %66 : vector<64x64xf32>
    %68 = arith.addf %63, %67 : vector<64x64xf32>
    %69 = arith.truncf %68 : vector<64x64xf32> to vector<64x64xbf16>
    %c0_49 = arith.constant 0 : index
    %c0_50 = arith.constant 0 : index
    %70 = vector.load %arg19[%c0_49, %c0_50] : memref<1x64xf32, #tpu.memory_space<vmem>>, vector<1x64xf32>
    %c0_51 = arith.constant 0 : index
    %c0_52 = arith.constant 0 : index
    %71 = vector.load %arg21[%c0_51, %c0_52] : memref<1x64xf32, #tpu.memory_space<vmem>>, vector<1x64xf32>
    %c0_53 = arith.constant 0 : index
    %c0_54 = arith.constant 0 : index
    %72 = vector.load %arg20[%c0_53, %c0_54] : memref<1x64xf32, #tpu.memory_space<vmem>>, vector<1x64xf32>
    %73 = math.exp %72 : vector<1x64xf32>
    %74 = arith.mulf %71, %73 : vector<1x64xf32>
    %75 = arith.addf %70, %74 : vector<1x64xf32>
    %c0_55 = arith.constant 0 : index
    %c0_56 = arith.constant 0 : index
    %76 = vector.load %arg22[%c0_55, %c0_56] : memref<64x256xf32, #tpu.memory_space<vmem>>, vector<64x256xf32>
    %c0_57 = arith.constant 0 : index
    %c0_58 = arith.constant 0 : index
    %77 = vector.load %arg24[%c0_57, %c0_58] : memref<64x256xf32, #tpu.memory_space<vmem>>, vector<64x256xf32>
    %c0_59 = arith.constant 0 : index
    %c0_60 = arith.constant 0 : index
    %78 = vector.load %arg23[%c0_59, %c0_60] : memref<64x256xf32, #tpu.memory_space<vmem>>, vector<64x256xf32>
    %79 = math.exp %78 : vector<64x256xf32>
    %80 = arith.mulf %77, %79 : vector<64x256xf32>
    %81 = arith.addf %76, %80 : vector<64x256xf32>
    %82 = arith.truncf %81 : vector<64x256xf32> to vector<64x256xbf16>
    %c0_61 = arith.constant 0 : index
    %c0_62 = arith.constant 0 : index
    %83 = vector.load %arg25[%c0_61, %c0_62] : memref<1x256xf32, #tpu.memory_space<vmem>>, vector<1x256xf32>
    %c0_63 = arith.constant 0 : index
    %c0_64 = arith.constant 0 : index
    %84 = vector.load %arg27[%c0_63, %c0_64] : memref<1x256xf32, #tpu.memory_space<vmem>>, vector<1x256xf32>
    %c0_65 = arith.constant 0 : index
    %c0_66 = arith.constant 0 : index
    %85 = vector.load %arg26[%c0_65, %c0_66] : memref<1x256xf32, #tpu.memory_space<vmem>>, vector<1x256xf32>
    %86 = math.exp %85 : vector<1x256xf32>
    %87 = arith.mulf %84, %86 : vector<1x256xf32>
    %88 = arith.addf %83, %87 : vector<1x256xf32>
    %89 = tpu.concatenate %49, %24 in 0 : vector<16x16xf32>, vector<16x16xf32> -> vector<32x16xf32>
    %90 = arith.truncf %89 : vector<32x16xf32> to vector<32x16xbf16>
    %cst_67 = arith.constant dense<0.000000e+00> : vector<32x64xf32>
    %91 = tpu.matmul %90, %56, %cst_67 {dimension_numbers = #tpu.dot_dimension_numbers<[1], [0], [0], [1], [0, 0, 1, 1], [], []>} : vector<32x16xbf16>, vector<16x64xbf16>, vector<32x64xf32> -> vector<32x64xf32>
    %92 = vector.broadcast %62 : vector<1x64xf32> to vector<32x64xf32>
    %93 = arith.addf %91, %92 : vector<32x64xf32>
    %cst_68 = arith.constant 0.000000e+00 : f32
    %94 = vector.broadcast %cst_68 : f32 to vector<32x64xf32>
    %95 = arith.maximumf %93, %94 : vector<32x64xf32>
    %96 = arith.truncf %95 : vector<32x64xf32> to vector<32x64xbf16>
    %cst_69 = arith.constant dense<0.000000e+00> : vector<32x64xf32>
    %97 = tpu.matmul %96, %69, %cst_69 {dimension_numbers = #tpu.dot_dimension_numbers<[1], [0], [0], [1], [0, 0, 1, 1], [], []>} : vector<32x64xbf16>, vector<64x64xbf16>, vector<32x64xf32> -> vector<32x64xf32>
    %98 = vector.broadcast %75 : vector<1x64xf32> to vector<32x64xf32>
    %99 = arith.addf %97, %98 : vector<32x64xf32>
    %100 = arith.negf %99 : vector<32x64xf32>
    %101 = math.exp %100 : vector<32x64xf32>
    %cst_70 = arith.constant 1.000000e+00 : f32
    %102 = vector.broadcast %cst_70 : f32 to vector<32x64xf32>
    %103 = arith.addf %102, %101 : vector<32x64xf32>
    %104 = arith.divf %102, %103 : vector<32x64xf32>
    %105 = arith.truncf %104 : vector<32x64xf32> to vector<32x64xbf16>
    %cst_71 = arith.constant dense<0.000000e+00> : vector<32x256xf32>
    %106 = tpu.matmul %105, %82, %cst_71 {dimension_numbers = #tpu.dot_dimension_numbers<[1], [0], [0], [1], [0, 0, 1, 1], [], []>} : vector<32x64xbf16>, vector<64x256xbf16>, vector<32x256xf32> -> vector<32x256xf32>
    %107 = vector.broadcast %88 : vector<1x256xf32> to vector<32x256xf32>
    %108 = arith.addf %106, %107 : vector<32x256xf32>
    %c0_72 = arith.constant 0 : index
    %c0_73 = arith.constant 0 : index
    %109 = vector.load %arg1[%c0_72, %c0_73] : memref<1x256xf32, #tpu.memory_space<vmem>>, vector<1x256xf32>
    %110 = vector.broadcast %109 : vector<1x256xf32> to vector<32x256xf32>
    %111 = arith.addf %108, %110 : vector<32x256xf32>
    %112 = vector.extract_strided_slice %111 {offsets = [0, 0], sizes = [16, 256], strides = [1, 1]} : vector<32x256xf32> to vector<16x256xf32>
    %113 = vector.extract_strided_slice %111 {offsets = [16, 0], sizes = [16, 256], strides = [1, 1]} : vector<32x256xf32> to vector<16x256xf32>
    %114 = arith.mulf %1, %112 : vector<16x256xf32>
    %cst_74 = arith.constant dense<0.000000e+00> : vector<16xf32>
    %115 = vector.multi_reduction <add>, %114, %cst_74 [1] : vector<16x256xf32> to vector<16xf32>
    %116 = vector.shape_cast %115 : vector<16xf32> to vector<16x1xf32>
    %cst_75 = arith.constant 0.000000e+00 : f32
    %117 = vector.broadcast %cst_75 : f32 to vector<16x1xf32>
    %cst_76 = arith.constant 0.000000e+00 : f32
    %118 = vector.broadcast %cst_76 : f32 to vector<16x1xf32>
    %119 = vector.extract_strided_slice %112 {offsets = [0, 0], sizes = [16, 32], strides = [1, 1]} : vector<16x256xf32> to vector<16x32xf32>
    %120 = vector.extract_strided_slice %113 {offsets = [0, 0], sizes = [16, 32], strides = [1, 1]} : vector<16x256xf32> to vector<16x32xf32>
    %121 = vector.extract_strided_slice %1 {offsets = [0, 0], sizes = [16, 32], strides = [1, 1]} : vector<16x256xf32> to vector<16x32xf32>
    %cst_77 = arith.constant dense<0xFF800000> : vector<16xf32>
    %122 = vector.multi_reduction <maximumf>, %119, %cst_77 [1] : vector<16x32xf32> to vector<16xf32>
    %123 = vector.shape_cast %122 : vector<16xf32> to vector<16x1xf32>
    %124 = vector.broadcast %123 : vector<16x1xf32> to vector<16x32xf32>
    %125 = arith.subf %119, %124 : vector<16x32xf32>
    %126 = math.exp %125 : vector<16x32xf32>
    %cst_78 = arith.constant dense<0.000000e+00> : vector<16xf32>
    %127 = vector.multi_reduction <add>, %126, %cst_78 [1] : vector<16x32xf32> to vector<16xf32>
    %128 = vector.shape_cast %127 : vector<16xf32> to vector<16x1xf32>
    %129 = math.log %128 : vector<16x1xf32>
    %130 = arith.addf %129, %123 : vector<16x1xf32>
    %131 = vector.broadcast %130 : vector<16x1xf32> to vector<16x32xf32>
    %132 = arith.subf %119, %131 : vector<16x32xf32>
    %133 = arith.addf %117, %130 : vector<16x1xf32>
    %cst_79 = arith.constant dense<0xFF800000> : vector<16xf32>
    %134 = vector.multi_reduction <maximumf>, %120, %cst_79 [1] : vector<16x32xf32> to vector<16xf32>
    %135 = vector.shape_cast %134 : vector<16xf32> to vector<16x1xf32>
    %136 = arith.mulf %121, %120 : vector<16x32xf32>
    %cst_80 = arith.constant dense<0.000000e+00> : vector<16xf32>
    %137 = vector.multi_reduction <add>, %136, %cst_80 [1] : vector<16x32xf32> to vector<16xf32>
    %138 = vector.shape_cast %137 : vector<16xf32> to vector<16x1xf32>
    %139 = arith.cmpf oge, %138, %135 : vector<16x1xf32>
    %140 = arith.extui %139 : vector<16x1xi1> to vector<16x1xi32>
    %141 = arith.sitofp %140 : vector<16x1xi32> to vector<16x1xf32>
    %142 = arith.addf %118, %141 : vector<16x1xf32>
    %143 = vector.extract_strided_slice %112 {offsets = [0, 32], sizes = [16, 32], strides = [1, 1]} : vector<16x256xf32> to vector<16x32xf32>
    %144 = vector.extract_strided_slice %113 {offsets = [0, 32], sizes = [16, 32], strides = [1, 1]} : vector<16x256xf32> to vector<16x32xf32>
    %145 = vector.extract_strided_slice %1 {offsets = [0, 32], sizes = [16, 32], strides = [1, 1]} : vector<16x256xf32> to vector<16x32xf32>
    %cst_81 = arith.constant dense<0xFF800000> : vector<16xf32>
    %146 = vector.multi_reduction <maximumf>, %143, %cst_81 [1] : vector<16x32xf32> to vector<16xf32>
    %147 = vector.shape_cast %146 : vector<16xf32> to vector<16x1xf32>
    %148 = vector.broadcast %147 : vector<16x1xf32> to vector<16x32xf32>
    %149 = arith.subf %143, %148 : vector<16x32xf32>
    %150 = math.exp %149 : vector<16x32xf32>
    %cst_82 = arith.constant dense<0.000000e+00> : vector<16xf32>
    %151 = vector.multi_reduction <add>, %150, %cst_82 [1] : vector<16x32xf32> to vector<16xf32>
    %152 = vector.shape_cast %151 : vector<16xf32> to vector<16x1xf32>
    %153 = math.log %152 : vector<16x1xf32>
    %154 = arith.addf %153, %147 : vector<16x1xf32>
    %155 = vector.broadcast %154 : vector<16x1xf32> to vector<16x32xf32>
    %156 = arith.subf %143, %155 : vector<16x32xf32>
    %157 = arith.addf %133, %154 : vector<16x1xf32>
    %cst_83 = arith.constant dense<0xFF800000> : vector<16xf32>
    %158 = vector.multi_reduction <maximumf>, %144, %cst_83 [1] : vector<16x32xf32> to vector<16xf32>
    %159 = vector.shape_cast %158 : vector<16xf32> to vector<16x1xf32>
    %160 = arith.mulf %145, %144 : vector<16x32xf32>
    %cst_84 = arith.constant dense<0.000000e+00> : vector<16xf32>
    %161 = vector.multi_reduction <add>, %160, %cst_84 [1] : vector<16x32xf32> to vector<16xf32>
    %162 = vector.shape_cast %161 : vector<16xf32> to vector<16x1xf32>
    %163 = arith.cmpf oge, %162, %159 : vector<16x1xf32>
    %164 = arith.extui %163 : vector<16x1xi1> to vector<16x1xi32>
    %165 = arith.sitofp %164 : vector<16x1xi32> to vector<16x1xf32>
    %166 = arith.addf %142, %165 : vector<16x1xf32>
    %167 = vector.extract_strided_slice %112 {offsets = [0, 64], sizes = [16, 32], strides = [1, 1]} : vector<16x256xf32> to vector<16x32xf32>
    %168 = vector.extract_strided_slice %113 {offsets = [0, 64], sizes = [16, 32], strides = [1, 1]} : vector<16x256xf32> to vector<16x32xf32>
    %169 = vector.extract_strided_slice %1 {offsets = [0, 64], sizes = [16, 32], strides = [1, 1]} : vector<16x256xf32> to vector<16x32xf32>
    %cst_85 = arith.constant dense<0xFF800000> : vector<16xf32>
    %170 = vector.multi_reduction <maximumf>, %167, %cst_85 [1] : vector<16x32xf32> to vector<16xf32>
    %171 = vector.shape_cast %170 : vector<16xf32> to vector<16x1xf32>
    %172 = vector.broadcast %171 : vector<16x1xf32> to vector<16x32xf32>
    %173 = arith.subf %167, %172 : vector<16x32xf32>
    %174 = math.exp %173 : vector<16x32xf32>
    %cst_86 = arith.constant dense<0.000000e+00> : vector<16xf32>
    %175 = vector.multi_reduction <add>, %174, %cst_86 [1] : vector<16x32xf32> to vector<16xf32>
    %176 = vector.shape_cast %175 : vector<16xf32> to vector<16x1xf32>
    %177 = math.log %176 : vector<16x1xf32>
    %178 = arith.addf %177, %171 : vector<16x1xf32>
    %179 = vector.broadcast %178 : vector<16x1xf32> to vector<16x32xf32>
    %180 = arith.subf %167, %179 : vector<16x32xf32>
    %181 = arith.addf %157, %178 : vector<16x1xf32>
    %cst_87 = arith.constant dense<0xFF800000> : vector<16xf32>
    %182 = vector.multi_reduction <maximumf>, %168, %cst_87 [1] : vector<16x32xf32> to vector<16xf32>
    %183 = vector.shape_cast %182 : vector<16xf32> to vector<16x1xf32>
    %184 = arith.mulf %169, %168 : vector<16x32xf32>
    %cst_88 = arith.constant dense<0.000000e+00> : vector<16xf32>
    %185 = vector.multi_reduction <add>, %184, %cst_88 [1] : vector<16x32xf32> to vector<16xf32>
    %186 = vector.shape_cast %185 : vector<16xf32> to vector<16x1xf32>
    %187 = arith.cmpf oge, %186, %183 : vector<16x1xf32>
    %188 = arith.extui %187 : vector<16x1xi1> to vector<16x1xi32>
    %189 = arith.sitofp %188 : vector<16x1xi32> to vector<16x1xf32>
    %190 = arith.addf %166, %189 : vector<16x1xf32>
    %191 = vector.extract_strided_slice %112 {offsets = [0, 96], sizes = [16, 32], strides = [1, 1]} : vector<16x256xf32> to vector<16x32xf32>
    %192 = vector.extract_strided_slice %113 {offsets = [0, 96], sizes = [16, 32], strides = [1, 1]} : vector<16x256xf32> to vector<16x32xf32>
    %193 = vector.extract_strided_slice %1 {offsets = [0, 96], sizes = [16, 32], strides = [1, 1]} : vector<16x256xf32> to vector<16x32xf32>
    %cst_89 = arith.constant dense<0xFF800000> : vector<16xf32>
    %194 = vector.multi_reduction <maximumf>, %191, %cst_89 [1] : vector<16x32xf32> to vector<16xf32>
    %195 = vector.shape_cast %194 : vector<16xf32> to vector<16x1xf32>
    %196 = vector.broadcast %195 : vector<16x1xf32> to vector<16x32xf32>
    %197 = arith.subf %191, %196 : vector<16x32xf32>
    %198 = math.exp %197 : vector<16x32xf32>
    %cst_90 = arith.constant dense<0.000000e+00> : vector<16xf32>
    %199 = vector.multi_reduction <add>, %198, %cst_90 [1] : vector<16x32xf32> to vector<16xf32>
    %200 = vector.shape_cast %199 : vector<16xf32> to vector<16x1xf32>
    %201 = math.log %200 : vector<16x1xf32>
    %202 = arith.addf %201, %195 : vector<16x1xf32>
    %203 = vector.broadcast %202 : vector<16x1xf32> to vector<16x32xf32>
    %204 = arith.subf %191, %203 : vector<16x32xf32>
    %205 = arith.addf %181, %202 : vector<16x1xf32>
    %cst_91 = arith.constant dense<0xFF800000> : vector<16xf32>
    %206 = vector.multi_reduction <maximumf>, %192, %cst_91 [1] : vector<16x32xf32> to vector<16xf32>
    %207 = vector.shape_cast %206 : vector<16xf32> to vector<16x1xf32>
    %208 = arith.mulf %193, %192 : vector<16x32xf32>
    %cst_92 = arith.constant dense<0.000000e+00> : vector<16xf32>
    %209 = vector.multi_reduction <add>, %208, %cst_92 [1] : vector<16x32xf32> to vector<16xf32>
    %210 = vector.shape_cast %209 : vector<16xf32> to vector<16x1xf32>
    %211 = arith.cmpf oge, %210, %207 : vector<16x1xf32>
    %212 = arith.extui %211 : vector<16x1xi1> to vector<16x1xi32>
    %213 = arith.sitofp %212 : vector<16x1xi32> to vector<16x1xf32>
    %214 = arith.addf %190, %213 : vector<16x1xf32>
    %215 = vector.extract_strided_slice %112 {offsets = [0, 128], sizes = [16, 32], strides = [1, 1]} : vector<16x256xf32> to vector<16x32xf32>
    %216 = vector.extract_strided_slice %113 {offsets = [0, 128], sizes = [16, 32], strides = [1, 1]} : vector<16x256xf32> to vector<16x32xf32>
    %217 = vector.extract_strided_slice %1 {offsets = [0, 128], sizes = [16, 32], strides = [1, 1]} : vector<16x256xf32> to vector<16x32xf32>
    %cst_93 = arith.constant dense<0xFF800000> : vector<16xf32>
    %218 = vector.multi_reduction <maximumf>, %215, %cst_93 [1] : vector<16x32xf32> to vector<16xf32>
    %219 = vector.shape_cast %218 : vector<16xf32> to vector<16x1xf32>
    %220 = vector.broadcast %219 : vector<16x1xf32> to vector<16x32xf32>
    %221 = arith.subf %215, %220 : vector<16x32xf32>
    %222 = math.exp %221 : vector<16x32xf32>
    %cst_94 = arith.constant dense<0.000000e+00> : vector<16xf32>
    %223 = vector.multi_reduction <add>, %222, %cst_94 [1] : vector<16x32xf32> to vector<16xf32>
    %224 = vector.shape_cast %223 : vector<16xf32> to vector<16x1xf32>
    %225 = math.log %224 : vector<16x1xf32>
    %226 = arith.addf %225, %219 : vector<16x1xf32>
    %227 = vector.broadcast %226 : vector<16x1xf32> to vector<16x32xf32>
    %228 = arith.subf %215, %227 : vector<16x32xf32>
    %229 = arith.addf %205, %226 : vector<16x1xf32>
    %cst_95 = arith.constant dense<0xFF800000> : vector<16xf32>
    %230 = vector.multi_reduction <maximumf>, %216, %cst_95 [1] : vector<16x32xf32> to vector<16xf32>
    %231 = vector.shape_cast %230 : vector<16xf32> to vector<16x1xf32>
    %232 = arith.mulf %217, %216 : vector<16x32xf32>
    %cst_96 = arith.constant dense<0.000000e+00> : vector<16xf32>
    %233 = vector.multi_reduction <add>, %232, %cst_96 [1] : vector<16x32xf32> to vector<16xf32>
    %234 = vector.shape_cast %233 : vector<16xf32> to vector<16x1xf32>
    %235 = arith.cmpf oge, %234, %231 : vector<16x1xf32>
    %236 = arith.extui %235 : vector<16x1xi1> to vector<16x1xi32>
    %237 = arith.sitofp %236 : vector<16x1xi32> to vector<16x1xf32>
    %238 = arith.addf %214, %237 : vector<16x1xf32>
    %239 = vector.extract_strided_slice %112 {offsets = [0, 160], sizes = [16, 32], strides = [1, 1]} : vector<16x256xf32> to vector<16x32xf32>
    %240 = vector.extract_strided_slice %113 {offsets = [0, 160], sizes = [16, 32], strides = [1, 1]} : vector<16x256xf32> to vector<16x32xf32>
    %241 = vector.extract_strided_slice %1 {offsets = [0, 160], sizes = [16, 32], strides = [1, 1]} : vector<16x256xf32> to vector<16x32xf32>
    %cst_97 = arith.constant dense<0xFF800000> : vector<16xf32>
    %242 = vector.multi_reduction <maximumf>, %239, %cst_97 [1] : vector<16x32xf32> to vector<16xf32>
    %243 = vector.shape_cast %242 : vector<16xf32> to vector<16x1xf32>
    %244 = vector.broadcast %243 : vector<16x1xf32> to vector<16x32xf32>
    %245 = arith.subf %239, %244 : vector<16x32xf32>
    %246 = math.exp %245 : vector<16x32xf32>
    %cst_98 = arith.constant dense<0.000000e+00> : vector<16xf32>
    %247 = vector.multi_reduction <add>, %246, %cst_98 [1] : vector<16x32xf32> to vector<16xf32>
    %248 = vector.shape_cast %247 : vector<16xf32> to vector<16x1xf32>
    %249 = math.log %248 : vector<16x1xf32>
    %250 = arith.addf %249, %243 : vector<16x1xf32>
    %251 = vector.broadcast %250 : vector<16x1xf32> to vector<16x32xf32>
    %252 = arith.subf %239, %251 : vector<16x32xf32>
    %253 = arith.addf %229, %250 : vector<16x1xf32>
    %cst_99 = arith.constant dense<0xFF800000> : vector<16xf32>
    %254 = vector.multi_reduction <maximumf>, %240, %cst_99 [1] : vector<16x32xf32> to vector<16xf32>
    %255 = vector.shape_cast %254 : vector<16xf32> to vector<16x1xf32>
    %256 = arith.mulf %241, %240 : vector<16x32xf32>
    %cst_100 = arith.constant dense<0.000000e+00> : vector<16xf32>
    %257 = vector.multi_reduction <add>, %256, %cst_100 [1] : vector<16x32xf32> to vector<16xf32>
    %258 = vector.shape_cast %257 : vector<16xf32> to vector<16x1xf32>
    %259 = arith.cmpf oge, %258, %255 : vector<16x1xf32>
    %260 = arith.extui %259 : vector<16x1xi1> to vector<16x1xi32>
    %261 = arith.sitofp %260 : vector<16x1xi32> to vector<16x1xf32>
    %262 = arith.addf %238, %261 : vector<16x1xf32>
    %263 = vector.extract_strided_slice %112 {offsets = [0, 192], sizes = [16, 32], strides = [1, 1]} : vector<16x256xf32> to vector<16x32xf32>
    %264 = vector.extract_strided_slice %113 {offsets = [0, 192], sizes = [16, 32], strides = [1, 1]} : vector<16x256xf32> to vector<16x32xf32>
    %265 = vector.extract_strided_slice %1 {offsets = [0, 192], sizes = [16, 32], strides = [1, 1]} : vector<16x256xf32> to vector<16x32xf32>
    %cst_101 = arith.constant dense<0xFF800000> : vector<16xf32>
    %266 = vector.multi_reduction <maximumf>, %263, %cst_101 [1] : vector<16x32xf32> to vector<16xf32>
    %267 = vector.shape_cast %266 : vector<16xf32> to vector<16x1xf32>
    %268 = vector.broadcast %267 : vector<16x1xf32> to vector<16x32xf32>
    %269 = arith.subf %263, %268 : vector<16x32xf32>
    %270 = math.exp %269 : vector<16x32xf32>
    %cst_102 = arith.constant dense<0.000000e+00> : vector<16xf32>
    %271 = vector.multi_reduction <add>, %270, %cst_102 [1] : vector<16x32xf32> to vector<16xf32>
    %272 = vector.shape_cast %271 : vector<16xf32> to vector<16x1xf32>
    %273 = math.log %272 : vector<16x1xf32>
    %274 = arith.addf %273, %267 : vector<16x1xf32>
    %275 = vector.broadcast %274 : vector<16x1xf32> to vector<16x32xf32>
    %276 = arith.subf %263, %275 : vector<16x32xf32>
    %277 = arith.addf %253, %274 : vector<16x1xf32>
    %cst_103 = arith.constant dense<0xFF800000> : vector<16xf32>
    %278 = vector.multi_reduction <maximumf>, %264, %cst_103 [1] : vector<16x32xf32> to vector<16xf32>
    %279 = vector.shape_cast %278 : vector<16xf32> to vector<16x1xf32>
    %280 = arith.mulf %265, %264 : vector<16x32xf32>
    %cst_104 = arith.constant dense<0.000000e+00> : vector<16xf32>
    %281 = vector.multi_reduction <add>, %280, %cst_104 [1] : vector<16x32xf32> to vector<16xf32>
    %282 = vector.shape_cast %281 : vector<16xf32> to vector<16x1xf32>
    %283 = arith.cmpf oge, %282, %279 : vector<16x1xf32>
    %284 = arith.extui %283 : vector<16x1xi1> to vector<16x1xi32>
    %285 = arith.sitofp %284 : vector<16x1xi32> to vector<16x1xf32>
    %286 = arith.addf %262, %285 : vector<16x1xf32>
    %287 = vector.extract_strided_slice %112 {offsets = [0, 224], sizes = [16, 32], strides = [1, 1]} : vector<16x256xf32> to vector<16x32xf32>
    %288 = vector.extract_strided_slice %113 {offsets = [0, 224], sizes = [16, 32], strides = [1, 1]} : vector<16x256xf32> to vector<16x32xf32>
    %289 = vector.extract_strided_slice %1 {offsets = [0, 224], sizes = [16, 32], strides = [1, 1]} : vector<16x256xf32> to vector<16x32xf32>
    %cst_105 = arith.constant dense<0xFF800000> : vector<16xf32>
    %290 = vector.multi_reduction <maximumf>, %287, %cst_105 [1] : vector<16x32xf32> to vector<16xf32>
    %291 = vector.shape_cast %290 : vector<16xf32> to vector<16x1xf32>
    %292 = vector.broadcast %291 : vector<16x1xf32> to vector<16x32xf32>
    %293 = arith.subf %287, %292 : vector<16x32xf32>
    %294 = math.exp %293 : vector<16x32xf32>
    %cst_106 = arith.constant dense<0.000000e+00> : vector<16xf32>
    %295 = vector.multi_reduction <add>, %294, %cst_106 [1] : vector<16x32xf32> to vector<16xf32>
    %296 = vector.shape_cast %295 : vector<16xf32> to vector<16x1xf32>
    %297 = math.log %296 : vector<16x1xf32>
    %298 = arith.addf %297, %291 : vector<16x1xf32>
    %299 = vector.broadcast %298 : vector<16x1xf32> to vector<16x32xf32>
    %300 = arith.subf %287, %299 : vector<16x32xf32>
    %301 = arith.addf %277, %298 : vector<16x1xf32>
    %cst_107 = arith.constant dense<0xFF800000> : vector<16xf32>
    %302 = vector.multi_reduction <maximumf>, %288, %cst_107 [1] : vector<16x32xf32> to vector<16xf32>
    %303 = vector.shape_cast %302 : vector<16xf32> to vector<16x1xf32>
    %304 = arith.mulf %289, %288 : vector<16x32xf32>
    %cst_108 = arith.constant dense<0.000000e+00> : vector<16xf32>
    %305 = vector.multi_reduction <add>, %304, %cst_108 [1] : vector<16x32xf32> to vector<16xf32>
    %306 = vector.shape_cast %305 : vector<16xf32> to vector<16x1xf32>
    %307 = arith.cmpf oge, %306, %303 : vector<16x1xf32>
    %308 = arith.extui %307 : vector<16x1xi1> to vector<16x1xi32>
    %309 = arith.sitofp %308 : vector<16x1xi32> to vector<16x1xf32>
    %310 = arith.addf %286, %309 : vector<16x1xf32>
    %311 = tpu.concatenate %132, %156, %180, %204, %228, %252, %276, %300 in 1 : vector<16x32xf32>, vector<16x32xf32>, vector<16x32xf32>, vector<16x32xf32>, vector<16x32xf32>, vector<16x32xf32>, vector<16x32xf32>, vector<16x32xf32> -> vector<16x256xf32>
    %c0_109 = arith.constant 0 : index
    %c0_110 = arith.constant 0 : index
    %312 = vector.load %arg29[%c0_109, %c0_110] : memref<16x256xf32, #tpu.memory_space<vmem>>, vector<16x256xf32>
    tpu.vector_store %arg29[%c0_109, %c0_110], %311 {strides = array<i32>} : memref<16x256xf32, #tpu.memory_space<vmem>>, vector<16x256xf32>,
    %313 = arith.subf %301, %116 : vector<16x1xf32>
    %c0_111 = arith.constant 0 : index
    %c0_112 = arith.constant 0 : index
    %314 = vector.load %arg10[%c0_111, %c0_112] : memref<16x64xf32, #tpu.memory_space<vmem>>, vector<16x64xf32>
    %c0_113 = arith.constant 0 : index
    %c0_114 = arith.constant 0 : index
    %315 = vector.load %arg11[%c0_113, %c0_114] : memref<16x64xf32, #tpu.memory_space<vmem>>, vector<16x64xf32>
    %cst_115 = arith.constant 5.000000e-01 : f32
    %316 = vector.broadcast %cst_115 : f32 to vector<16x64xf32>
    %317 = arith.mulf %316, %315 : vector<16x64xf32>
    %cst_116 = arith.constant -5.000000e-01 : f32
    %318 = vector.broadcast %cst_116 : f32 to vector<16x64xf32>
    %319 = arith.subf %318, %317 : vector<16x64xf32>
    %cst_117 = arith.constant 5.000000e-01 : f32
    %320 = vector.broadcast %cst_117 : f32 to vector<16x64xf32>
    %321 = arith.mulf %320, %314 : vector<16x64xf32>
    %322 = arith.mulf %321, %314 : vector<16x64xf32>
    %323 = arith.addf %319, %322 : vector<16x64xf32>
    %324 = math.exp %315 : vector<16x64xf32>
    %cst_118 = arith.constant 5.000000e-01 : f32
    %325 = vector.broadcast %cst_118 : f32 to vector<16x64xf32>
    %326 = arith.mulf %325, %324 : vector<16x64xf32>
    %327 = arith.addf %323, %326 : vector<16x64xf32>
    %328 = vector.shape_cast %327 : vector<16x64xf32> to vector<1x16x64xf32>
    %cst_119 = arith.constant dense<0.000000e+00> : vector<1xf32>
    %329 = vector.multi_reduction <add>, %328, %cst_119 [1, 2] : vector<1x16x64xf32> to vector<1xf32>
    %330 = vector.shape_cast %329 : vector<1xf32> to vector<1x1x1xf32>
    %331 = vector.extract %330[0, 0, 0] : f32 from vector<1x1x1xf32>
    %c0_120 = arith.constant 0 : index
    %c0_121 = arith.constant 0 : index
    %332 = vector.load %arg13[%c0_120, %c0_121] : memref<1x64xf32, #tpu.memory_space<vmem>>, vector<1x64xf32>
    %c0_122 = arith.constant 0 : index
    %c0_123 = arith.constant 0 : index
    %333 = vector.load %arg14[%c0_122, %c0_123] : memref<1x64xf32, #tpu.memory_space<vmem>>, vector<1x64xf32>
    %cst_124 = arith.constant 5.000000e-01 : f32
    %334 = vector.broadcast %cst_124 : f32 to vector<1x64xf32>
    %335 = arith.mulf %334, %333 : vector<1x64xf32>
    %cst_125 = arith.constant -5.000000e-01 : f32
    %336 = vector.broadcast %cst_125 : f32 to vector<1x64xf32>
    %337 = arith.subf %336, %335 : vector<1x64xf32>
    %cst_126 = arith.constant 5.000000e-01 : f32
    %338 = vector.broadcast %cst_126 : f32 to vector<1x64xf32>
    %339 = arith.mulf %338, %332 : vector<1x64xf32>
    %340 = arith.mulf %339, %332 : vector<1x64xf32>
    %341 = arith.addf %337, %340 : vector<1x64xf32>
    %342 = math.exp %333 : vector<1x64xf32>
    %cst_127 = arith.constant 5.000000e-01 : f32
    %343 = vector.broadcast %cst_127 : f32 to vector<1x64xf32>
    %344 = arith.mulf %343, %342 : vector<1x64xf32>
    %345 = arith.addf %341, %344 : vector<1x64xf32>
    %346 = vector.shape_cast %345 : vector<1x64xf32> to vector<1x1x64xf32>
    %cst_128 = arith.constant dense<0.000000e+00> : vector<1xf32>
    %347 = vector.multi_reduction <add>, %346, %cst_128 [1, 2] : vector<1x1x64xf32> to vector<1xf32>
    %348 = vector.shape_cast %347 : vector<1xf32> to vector<1x1x1xf32>
    %349 = vector.extract %348[0, 0, 0] : f32 from vector<1x1x1xf32>
    %350 = arith.addf %331, %349 : f32
    %c0_129 = arith.constant 0 : index
    %c0_130 = arith.constant 0 : index
    %351 = vector.load %arg16[%c0_129, %c0_130] : memref<64x64xf32, #tpu.memory_space<vmem>>, vector<64x64xf32>
    %c0_131 = arith.constant 0 : index
    %c0_132 = arith.constant 0 : index
    %352 = vector.load %arg17[%c0_131, %c0_132] : memref<64x64xf32, #tpu.memory_space<vmem>>, vector<64x64xf32>
    %cst_133 = arith.constant 5.000000e-01 : f32
    %353 = vector.broadcast %cst_133 : f32 to vector<64x64xf32>
    %354 = arith.mulf %353, %352 : vector<64x64xf32>
    %cst_134 = arith.constant -5.000000e-01 : f32
    %355 = vector.broadcast %cst_134 : f32 to vector<64x64xf32>
    %356 = arith.subf %355, %354 : vector<64x64xf32>
    %cst_135 = arith.constant 5.000000e-01 : f32
    %357 = vector.broadcast %cst_135 : f32 to vector<64x64xf32>
    %358 = arith.mulf %357, %351 : vector<64x64xf32>
    %359 = arith.mulf %358, %351 : vector<64x64xf32>
    %360 = arith.addf %356, %359 : vector<64x64xf32>
    %361 = math.exp %352 : vector<64x64xf32>
    %cst_136 = arith.constant 5.000000e-01 : f32
    %362 = vector.broadcast %cst_136 : f32 to vector<64x64xf32>
    %363 = arith.mulf %362, %361 : vector<64x64xf32>
    %364 = arith.addf %360, %363 : vector<64x64xf32>
    %365 = vector.shape_cast %364 : vector<64x64xf32> to vector<1x64x64xf32>
    %cst_137 = arith.constant dense<0.000000e+00> : vector<1xf32>
    %366 = vector.multi_reduction <add>, %365, %cst_137 [1, 2] : vector<1x64x64xf32> to vector<1xf32>
    %367 = vector.shape_cast %366 : vector<1xf32> to vector<1x1x1xf32>
    %368 = vector.extract %367[0, 0, 0] : f32 from vector<1x1x1xf32>
    %369 = arith.addf %350, %368 : f32
    %c0_138 = arith.constant 0 : index
    %c0_139 = arith.constant 0 : index
    %370 = vector.load %arg19[%c0_138, %c0_139] : memref<1x64xf32, #tpu.memory_space<vmem>>, vector<1x64xf32>
    %c0_140 = arith.constant 0 : index
    %c0_141 = arith.constant 0 : index
    %371 = vector.load %arg20[%c0_140, %c0_141] : memref<1x64xf32, #tpu.memory_space<vmem>>, vector<1x64xf32>
    %cst_142 = arith.constant 5.000000e-01 : f32
    %372 = vector.broadcast %cst_142 : f32 to vector<1x64xf32>
    %373 = arith.mulf %372, %371 : vector<1x64xf32>
    %cst_143 = arith.constant -5.000000e-01 : f32
    %374 = vector.broadcast %cst_143 : f32 to vector<1x64xf32>
    %375 = arith.subf %374, %373 : vector<1x64xf32>
    %cst_144 = arith.constant 5.000000e-01 : f32
    %376 = vector.broadcast %cst_144 : f32 to vector<1x64xf32>
    %377 = arith.mulf %376, %370 : vector<1x64xf32>
    %378 = arith.mulf %377, %370 : vector<1x64xf32>
    %379 = arith.addf %375, %378 : vector<1x64xf32>
    %380 = math.exp %371 : vector<1x64xf32>
    %cst_145 = arith.constant 5.000000e-01 : f32
    %381 = vector.broadcast %cst_145 : f32 to vector<1x64xf32>
    %382 = arith.mulf %381, %380 : vector<1x64xf32>
    %383 = arith.addf %379, %382 : vector<1x64xf32>
    %384 = vector.shape_cast %383 : vector<1x64xf32> to vector<1x1x64xf32>
    %cst_146 = arith.constant dense<0.000000e+00> : vector<1xf32>
    %385 = vector.multi_reduction <add>, %384, %cst_146 [1, 2] : vector<1x1x64xf32> to vector<1xf32>
    %386 = vector.shape_cast %385 : vector<1xf32> to vector<1x1x1xf32>
    %387 = vector.extract %386[0, 0, 0] : f32 from vector<1x1x1xf32>
    %388 = arith.addf %369, %387 : f32
    %c0_147 = arith.constant 0 : index
    %c0_148 = arith.constant 0 : index
    %389 = vector.load %arg22[%c0_147, %c0_148] : memref<64x256xf32, #tpu.memory_space<vmem>>, vector<64x256xf32>
    %c0_149 = arith.constant 0 : index
    %c0_150 = arith.constant 0 : index
    %390 = vector.load %arg23[%c0_149, %c0_150] : memref<64x256xf32, #tpu.memory_space<vmem>>, vector<64x256xf32>
    %cst_151 = arith.constant 5.000000e-01 : f32
    %391 = vector.broadcast %cst_151 : f32 to vector<64x256xf32>
    %392 = arith.mulf %391, %390 : vector<64x256xf32>
    %cst_152 = arith.constant -5.000000e-01 : f32
    %393 = vector.broadcast %cst_152 : f32 to vector<64x256xf32>
    %394 = arith.subf %393, %392 : vector<64x256xf32>
    %cst_153 = arith.constant 5.000000e-01 : f32
    %395 = vector.broadcast %cst_153 : f32 to vector<64x256xf32>
    %396 = arith.mulf %395, %389 : vector<64x256xf32>
    %397 = arith.mulf %396, %389 : vector<64x256xf32>
    %398 = arith.addf %394, %397 : vector<64x256xf32>
    %399 = math.exp %390 : vector<64x256xf32>
    %cst_154 = arith.constant 5.000000e-01 : f32
    %400 = vector.broadcast %cst_154 : f32 to vector<64x256xf32>
    %401 = arith.mulf %400, %399 : vector<64x256xf32>
    %402 = arith.addf %398, %401 : vector<64x256xf32>
    %403 = vector.shape_cast %402 : vector<64x256xf32> to vector<1x64x256xf32>
    %cst_155 = arith.constant dense<0.000000e+00> : vector<1xf32>
    %404 = vector.multi_reduction <add>, %403, %cst_155 [1, 2] : vector<1x64x256xf32> to vector<1xf32>
    %405 = vector.shape_cast %404 : vector<1xf32> to vector<1x1x1xf32>
    %406 = vector.extract %405[0, 0, 0] : f32 from vector<1x1x1xf32>
    %407 = arith.addf %388, %406 : f32
    %c0_156 = arith.constant 0 : index
    %c0_157 = arith.constant 0 : index
    %408 = vector.load %arg25[%c0_156, %c0_157] : memref<1x256xf32, #tpu.memory_space<vmem>>, vector<1x256xf32>
    %c0_158 = arith.constant 0 : index
    %c0_159 = arith.constant 0 : index
    %409 = vector.load %arg26[%c0_158, %c0_159] : memref<1x256xf32, #tpu.memory_space<vmem>>, vector<1x256xf32>
    %cst_160 = arith.constant 5.000000e-01 : f32
    %410 = vector.broadcast %cst_160 : f32 to vector<1x256xf32>
    %411 = arith.mulf %410, %409 : vector<1x256xf32>
    %cst_161 = arith.constant -5.000000e-01 : f32
    %412 = vector.broadcast %cst_161 : f32 to vector<1x256xf32>
    %413 = arith.subf %412, %411 : vector<1x256xf32>
    %cst_162 = arith.constant 5.000000e-01 : f32
    %414 = vector.broadcast %cst_162 : f32 to vector<1x256xf32>
    %415 = arith.mulf %414, %408 : vector<1x256xf32>
    %416 = arith.mulf %415, %408 : vector<1x256xf32>
    %417 = arith.addf %413, %416 : vector<1x256xf32>
    %418 = math.exp %409 : vector<1x256xf32>
    %cst_163 = arith.constant 5.000000e-01 : f32
    %419 = vector.broadcast %cst_163 : f32 to vector<1x256xf32>
    %420 = arith.mulf %419, %418 : vector<1x256xf32>
    %421 = arith.addf %417, %420 : vector<1x256xf32>
    %422 = vector.shape_cast %421 : vector<1x256xf32> to vector<1x1x256xf32>
    %cst_164 = arith.constant dense<0.000000e+00> : vector<1xf32>
    %423 = vector.multi_reduction <add>, %422, %cst_164 [1, 2] : vector<1x1x256xf32> to vector<1xf32>
    %424 = vector.shape_cast %423 : vector<1xf32> to vector<1x1x1xf32>
    %425 = vector.extract %424[0, 0, 0] : f32 from vector<1x1x1xf32>
    %426 = arith.addf %407, %425 : f32
    %427 = tpu.iota {dimensions = array<i32: 0>} : vector<8x128xi32>
    %428 = tpu.iota {dimensions = array<i32: 1>} : vector<8x128xi32>
    %cst_165 = arith.constant 0.000000e+00 : f32
    %429 = vector.broadcast %cst_165 : f32 to vector<8x128xf32>
    %430 = vector.shape_cast %313 : vector<16x1xf32> to vector<1x16x1xf32>
    %cst_166 = arith.constant dense<0.000000e+00> : vector<1xf32>
    %431 = vector.multi_reduction <add>, %430, %cst_166 [1, 2] : vector<1x16x1xf32> to vector<1xf32>
    %432 = vector.shape_cast %431 : vector<1xf32> to vector<1x1x1xf32>
    %433 = vector.extract %432[0, 0, 0] : f32 from vector<1x1x1xf32>
    %434 = vector.shape_cast %43 : vector<16x1xf32> to vector<1x16x1xf32>
    %cst_167 = arith.constant dense<0.000000e+00> : vector<1xf32>
    %435 = vector.multi_reduction <add>, %434, %cst_167 [1, 2] : vector<1x16x1xf32> to vector<1xf32>
    %436 = vector.shape_cast %435 : vector<1xf32> to vector<1x1x1xf32>
    %437 = vector.extract %436[0, 0, 0] : f32 from vector<1x1x1xf32>
    %438 = vector.shape_cast %310 : vector<16x1xf32> to vector<1x16x1xf32>
    %cst_168 = arith.constant dense<0.000000e+00> : vector<1xf32>
    %439 = vector.multi_reduction <add>, %438, %cst_168 [1, 2] : vector<1x16x1xf32> to vector<1xf32>
    %440 = vector.shape_cast %439 : vector<1xf32> to vector<1x1x1xf32>
    %441 = vector.extract %440[0, 0, 0] : f32 from vector<1x1x1xf32>
    %c0_i32 = arith.constant 0 : i32
    %442 = vector.broadcast %c0_i32 : i32 to vector<8x128xi32>
    %443 = arith.cmpi eq, %427, %442 : vector<8x128xi32>
    %c0_i32_169 = arith.constant 0 : i32
    %444 = vector.broadcast %c0_i32_169 : i32 to vector<8x128xi32>
    %445 = arith.cmpi eq, %428, %444 : vector<8x128xi32>
    %446 = arith.andi %443, %445 : vector<8x128xi1>
    %447 = vector.broadcast %433 : f32 to vector<8x128xf32>
    %448 = arith.select %446, %447, %429 : vector<8x128xi1>, vector<8x128xf32>
    %c0_i32_170 = arith.constant 0 : i32
    %449 = vector.broadcast %c0_i32_170 : i32 to vector<8x128xi32>
    %450 = arith.cmpi eq, %427, %449 : vector<8x128xi32>
    %c1_i32 = arith.constant 1 : i32
    %451 = vector.broadcast %c1_i32 : i32 to vector<8x128xi32>
    %452 = arith.cmpi eq, %428, %451 : vector<8x128xi32>
    %453 = arith.andi %450, %452 : vector<8x128xi1>
    %454 = vector.broadcast %437 : f32 to vector<8x128xf32>
    %455 = arith.select %453, %454, %448 : vector<8x128xi1>, vector<8x128xf32>
    %c0_i32_171 = arith.constant 0 : i32
    %456 = vector.broadcast %c0_i32_171 : i32 to vector<8x128xi32>
    %457 = arith.cmpi eq, %427, %456 : vector<8x128xi32>
    %c2_i32 = arith.constant 2 : i32
    %458 = vector.broadcast %c2_i32 : i32 to vector<8x128xi32>
    %459 = arith.cmpi eq, %428, %458 : vector<8x128xi32>
    %460 = arith.andi %457, %459 : vector<8x128xi1>
    %461 = vector.broadcast %441 : f32 to vector<8x128xf32>
    %462 = arith.select %460, %461, %455 : vector<8x128xi1>, vector<8x128xf32>
    %c0_i32_172 = arith.constant 0 : i32
    %463 = vector.broadcast %c0_i32_172 : i32 to vector<8x128xi32>
    %464 = arith.cmpi eq, %427, %463 : vector<8x128xi32>
    %c3_i32 = arith.constant 3 : i32
    %465 = vector.broadcast %c3_i32 : i32 to vector<8x128xi32>
    %466 = arith.cmpi eq, %428, %465 : vector<8x128xi32>
    %467 = arith.andi %464, %466 : vector<8x128xi1>
    %468 = vector.broadcast %426 : f32 to vector<8x128xf32>
    %469 = arith.select %467, %468, %462 : vector<8x128xi1>, vector<8x128xf32>
    %c0_173 = arith.constant 0 : index
    %c0_174 = arith.constant 0 : index
    %470 = vector.load %arg30[%c0_173, %c0_174] : memref<8x128xf32, #tpu.memory_space<vmem>>, vector<8x128xf32>
    tpu.vector_store %arg30[%c0_173, %c0_174], %469 {strides = array<i32>} : memref<8x128xf32, #tpu.memory_space<vmem>>, vector<8x128xf32>,
    return
  }
}

</mosaic_0001>

<llo_original>
// kernel: vae_forward.3
$region0: #{vae_forward.3}
  #allocation0 [shape = 'u32[]', space=smem, size = 0x4, offset = 0x4, fixed_abs, tag = 'smem constant byte address 0x4 - core index']
  #allocation1 [shape = 'u32[144,128]{1,0:T(1,128)}', space=vmem, size = 0x12000, scoped, tag = 'internal scratch']
  %s0 = inlined_call_operand.smem [shape: u32[31], index: -1, kind: input, shape index: {}]
  %s1 = sld [smem:[%s0]]
  %s2 = scalar_lea.smem %s0, 1
  %s3 = sld [smem:[%s2]]
  %s4 = scalar_lea.smem %s0, 2
  %s5 = sld [smem:[%s4]]
  %s6 = scalar_lea.smem %s0, 3
  %s7 = sld [smem:[%s6]]
  %s8 = scalar_lea.smem %s0, 4
  %s9 = sld [smem:[%s8]]
  %s10 = scalar_lea.smem %s0, 5
  %s11 = sld [smem:[%s10]]
  %s12 = scalar_lea.smem %s0, 6
  %s13 = sld [smem:[%s12]]
  %s14 = scalar_lea.smem %s0, 7
  %s15 = sld [smem:[%s14]]
  %s16 = scalar_lea.smem %s0, 8
  %s17 = sld [smem:[%s16]]
  %s18 = scalar_lea.smem %s0, 9
  %s19 = sld [smem:[%s18]]
  %s20 = scalar_lea.smem %s0, 10
  %s21 = sld [smem:[%s20]]
  %s22 = scalar_lea.smem %s0, 11
  %s23 = sld [smem:[%s22]]
  %s24 = scalar_lea.smem %s0, 12
  %s25 = sld [smem:[%s24]]
  %s26 = scalar_lea.smem %s0, 13
  %s27 = sld [smem:[%s26]]
  %s28 = scalar_lea.smem %s0, 14
  %s29 = sld [smem:[%s28]]
  %s30 = scalar_lea.smem %s0, 15
  %s31 = sld [smem:[%s30]]
  %s32 = scalar_lea.smem %s0, 16
  %s33 = sld [smem:[%s32]]
  %s34 = scalar_lea.smem %s0, 17
  %s35 = sld [smem:[%s34]]
  %s36 = scalar_lea.smem %s0, 18
  %s37 = sld [smem:[%s36]]
  %s38 = scalar_lea.smem %s0, 19
  %s39 = sld [smem:[%s38]]
  %s40 = scalar_lea.smem %s0, 20
  %s41 = sld [smem:[%s40]]
  %s42 = scalar_lea.smem %s0, 21
  %s43 = sld [smem:[%s42]]
  %s44 = scalar_lea.smem %s0, 22
  %s45 = sld [smem:[%s44]]
  %s46 = scalar_lea.smem %s0, 23
  %s47 = sld [smem:[%s46]]
  %s48 = scalar_lea.smem %s0, 24
  %s49 = sld [smem:[%s48]]
  %s50 = scalar_lea.smem %s0, 25
  %s51 = sld [smem:[%s50]]
  %s52 = scalar_lea.smem %s0, 26
  %s53 = sld [smem:[%s52]]
  %s54 = scalar_lea.smem %s0, 27
  %s55 = sld [smem:[%s54]]
  %s56 = scalar_lea.smem %s0, 28
  %s57 = sld [smem:[%s56]]
  %s58 = scalar_lea.smem %s0, 29
  %s59 = sld [smem:[%s58]]
  %s60 = scalar_lea.smem %s0, 30
  %s61 = sld [smem:[%s60]]
  %62 = xla_tuple %s59, %s61
  %s63 = sld [smem:[#allocation0]]
  $region134: #{vae_forward.3} parent=0
    _
  %s65 = ssub.s32 1, %s63
  %s66 = scalar_select 0, %s65, %s63
  // Predicated region
  $region2: #{vae_forward.3} parent=0 // pred_check
    _
  $region3: #{vae_forward.3} parent=0 // pred_check_branch
    %68 = sbr.rel (0) target = $region5
  $region4: #{vae_forward.3} parent=0 // pred_region
    _
  $region5: #{vae_forward.3} parent=0 // pred_fallthru
    _
  // Predicated region
  $region6: #{vae_forward.3} parent=0 // pred_check
    _
  $region7: #{vae_forward.3} parent=0 // pred_check_branch
    %70 = sbr.rel (0) target = $region9
  $region8: #{vae_forward.3} parent=0 // pred_region
    _
  $region9: #{vae_forward.3} parent=0 // pred_fallthru
    _
  // Predicated region
  $region10: #{vae_forward.3} parent=0 // pred_check
    _
  $region11: #{vae_forward.3} parent=0 // pred_check_branch
    %72 = sbr.rel (0) target = $region13
  $region12: #{vae_forward.3} parent=0 // pred_region
    _
  $region13: #{vae_forward.3} parent=0 // pred_fallthru
    _
  // Predicated region
  $region14: #{vae_forward.3} parent=0 // pred_check
    _
  $region15: #{vae_forward.3} parent=0 // pred_check_branch
    %74 = sbr.rel (0) target = $region17
  $region16: #{vae_forward.3} parent=0 // pred_region
    _
  $region17: #{vae_forward.3} parent=0 // pred_fallthru
    _
  // Predicated region
  $region18: #{vae_forward.3} parent=0 // pred_check
    _
  $region19: #{vae_forward.3} parent=0 // pred_check_branch
    %76 = sbr.rel (0) target = $region21
  $region20: #{vae_forward.3} parent=0 // pred_region
    _
  $region21: #{vae_forward.3} parent=0 // pred_fallthru
    _
  // Predicated region
  $region22: #{vae_forward.3} parent=0 // pred_check
    _
  $region23: #{vae_forward.3} parent=0 // pred_check_branch
    %78 = sbr.rel (0) target = $region25
  $region24: #{vae_forward.3} parent=0 // pred_region
    _
  $region25: #{vae_forward.3} parent=0 // pred_fallthru
    _
  // Predicated region
  $region26: #{vae_forward.3} parent=0 // pred_check
    _
  $region27: #{vae_forward.3} parent=0 // pred_check_branch
    %80 = sbr.rel (0) target = $region29
  $region28: #{vae_forward.3} parent=0 // pred_region
    _
  $region29: #{vae_forward.3} parent=0 // pred_fallthru
    _
  // Predicated region
  $region30: #{vae_forward.3} parent=0 // pred_check
    _
  $region31: #{vae_forward.3} parent=0 // pred_check_branch
    %82 = sbr.rel (0) target = $region33
  $region32: #{vae_forward.3} parent=0 // pred_region
    _
  $region33: #{vae_forward.3} parent=0 // pred_fallthru
    _
  // Predicated region
  $region34: #{vae_forward.3} parent=0 // pred_check
    _
  $region35: #{vae_forward.3} parent=0 // pred_check_branch
    %84 = sbr.rel (0) target = $region37
  $region36: #{vae_forward.3} parent=0 // pred_region
    _
  $region37: #{vae_forward.3} parent=0 // pred_fallthru
    _
  // Predicated region
  $region38: #{vae_forward.3} parent=0 // pred_check
    _
  $region39: #{vae_forward.3} parent=0 // pred_check_branch
    %86 = sbr.rel (0) target = $region41
  $region40: #{vae_forward.3} parent=0 // pred_region
    _
  $region41: #{vae_forward.3} parent=0 // pred_fallthru
    _
  // Predicated region
  $region42: #{vae_forward.3} parent=0 // pred_check
    _
  $region43: #{vae_forward.3} parent=0 // pred_check_branch
    %88 = sbr.rel (0) target = $region45
  $region44: #{vae_forward.3} parent=0 // pred_region
    _
  $region45: #{vae_forward.3} parent=0 // pred_fallthru
    _
  // Predicated region
  $region46: #{vae_forward.3} parent=0 // pred_check
    _
  $region47: #{vae_forward.3} parent=0 // pred_check_branch
    %90 = sbr.rel (0) target = $region49
  $region48: #{vae_forward.3} parent=0 // pred_region
    _
  $region49: #{vae_forward.3} parent=0 // pred_fallthru
    _
  // Predicated region
  $region50: #{vae_forward.3} parent=0 // pred_check
    _
  $region51: #{vae_forward.3} parent=0 // pred_check_branch
    %92 = sbr.rel (0) target = $region53
  $region52: #{vae_forward.3} parent=0 // pred_region
    _
  $region53: #{vae_forward.3} parent=0 // pred_fallthru
    _
  // Predicated region
  $region54: #{vae_forward.3} parent=0 // pred_check
    _
  $region55: #{vae_forward.3} parent=0 // pred_check_branch
    %94 = sbr.rel (0) target = $region57
  $region56: #{vae_forward.3} parent=0 // pred_region
    _
  $region57: #{vae_forward.3} parent=0 // pred_fallthru
    _
  // Predicated region
  $region58: #{vae_forward.3} parent=0 // pred_check
    _
  $region59: #{vae_forward.3} parent=0 // pred_check_branch
    %96 = sbr.rel (0) target = $region61
  $region60: #{vae_forward.3} parent=0 // pred_region
    _
  $region61: #{vae_forward.3} parent=0 // pred_fallthru
    _
  // Predicated region
  $region62: #{vae_forward.3} parent=0 // pred_check
    _
  $region63: #{vae_forward.3} parent=0 // pred_check_branch
    %98 = sbr.rel (0) target = $region65
  $region64: #{vae_forward.3} parent=0 // pred_region
    _
  $region65: #{vae_forward.3} parent=0 // pred_fallthru
    _
  // Predicated region
  $region66: #{vae_forward.3} parent=0 // pred_check
    _
  $region67: #{vae_forward.3} parent=0 // pred_check_branch
    %100 = sbr.rel (0) target = $region69
  $region68: #{vae_forward.3} parent=0 // pred_region
    _
  $region69: #{vae_forward.3} parent=0 // pred_fallthru
    _
  // Predicated region
  $region70: #{vae_forward.3} parent=0 // pred_check
    _
  $region71: #{vae_forward.3} parent=0 // pred_check_branch
    %102 = sbr.rel (0) target = $region73
  $region72: #{vae_forward.3} parent=0 // pred_region
    _
  $region73: #{vae_forward.3} parent=0 // pred_fallthru
    _
  // Predicated region
  $region74: #{vae_forward.3} parent=0 // pred_check
    _
  $region75: #{vae_forward.3} parent=0 // pred_check_branch
    %104 = sbr.rel (0) target = $region77
  $region76: #{vae_forward.3} parent=0 // pred_region
    _
  $region77: #{vae_forward.3} parent=0 // pred_fallthru
    _
  // Predicated region
  $region78: #{vae_forward.3} parent=0 // pred_check
    _
  $region79: #{vae_forward.3} parent=0 // pred_check_branch
    %106 = sbr.rel (0) target = $region81
  $region80: #{vae_forward.3} parent=0 // pred_region
    _
  $region81: #{vae_forward.3} parent=0 // pred_fallthru
    _
  // Predicated region
  $region82: #{vae_forward.3} parent=0 // pred_check
    _
  $region83: #{vae_forward.3} parent=0 // pred_check_branch
    %108 = sbr.rel (0) target = $region85
  $region84: #{vae_forward.3} parent=0 // pred_region
    _
  $region85: #{vae_forward.3} parent=0 // pred_fallthru
    _
  // Predicated region
  $region86: #{vae_forward.3} parent=0 // pred_check
    _
  $region87: #{vae_forward.3} parent=0 // pred_check_branch
    %110 = sbr.rel (0) target = $region89
  $region88: #{vae_forward.3} parent=0 // pred_region
    _
  $region89: #{vae_forward.3} parent=0 // pred_fallthru
    _
  // Predicated region
  $region90: #{vae_forward.3} parent=0 // pred_check
    _
  $region91: #{vae_forward.3} parent=0 // pred_check_branch
    %112 = sbr.rel (0) target = $region93
  $region92: #{vae_forward.3} parent=0 // pred_region
    _
  $region93: #{vae_forward.3} parent=0 // pred_fallthru
    _
  // Predicated region
  $region94: #{vae_forward.3} parent=0 // pred_check
    _
  $region95: #{vae_forward.3} parent=0 // pred_check_branch
    %114 = sbr.rel (0) target = $region97
  $region96: #{vae_forward.3} parent=0 // pred_region
    _
  $region97: #{vae_forward.3} parent=0 // pred_fallthru
    _
  // Predicated region
  $region98: #{vae_forward.3} parent=0 // pred_check
    _
  $region99: #{vae_forward.3} parent=0 // pred_check_branch
    %116 = sbr.rel (0) target = $region101
  $region100: #{vae_forward.3} parent=0 // pred_region
    _
  $region101: #{vae_forward.3} parent=0 // pred_fallthru
    _
  // Predicated region
  $region102: #{vae_forward.3} parent=0 // pred_check
    _
  $region103: #{vae_forward.3} parent=0 // pred_check_branch
    %118 = sbr.rel (0) target = $region105
  $region104: #{vae_forward.3} parent=0 // pred_region
    _
  $region105: #{vae_forward.3} parent=0 // pred_fallthru
    _
  // Predicated region
  $region106: #{vae_forward.3} parent=0 // pred_check
    _
  $region107: #{vae_forward.3} parent=0 // pred_check_branch
    %120 = sbr.rel (0) target = $region109
  $region108: #{vae_forward.3} parent=0 // pred_region
    _
  $region109: #{vae_forward.3} parent=0 // pred_fallthru
    _
  // Predicated region
  $region110: #{vae_forward.3} parent=0 // pred_check
    _
  $region111: #{vae_forward.3} parent=0 // pred_check_branch
    %122 = sbr.rel (0) target = $region113
  $region112: #{vae_forward.3} parent=0 // pred_region
    _
  $region113: #{vae_forward.3} parent=0 // pred_fallthru
    _
  // Predicated region
  $region114: #{vae_forward.3} parent=0 // pred_check
    _
  $region115: #{vae_forward.3} parent=0 // pred_check_branch
    %124 = sbr.rel (0) target = $region117
  $region116: #{vae_forward.3} parent=0 // pred_region
    _
  $region117: #{vae_forward.3} parent=0 // pred_fallthru
    _
  %v126 = vld [vmem:[%s1] sm:$0xff]
  %v127 = vld [vmem:[%s1 + $0x8] sm:$0xff]
  %v128 = vunpack.c.l.bf16 %v126
  %v129 = vunpack.c.h.bf16 %v126
  %v130 = vunpack.c.l.bf16 %v127
  %v131 = vunpack.c.h.bf16 %v127
  %v132 = vld [vmem:[%s5] sm:$0xf]
  %v133 = vld [vmem:[%s5 + $0x4] sm:$0xf]
  %v134 = vld [vmem:[%s5 + $0x8] sm:$0xf]
  %v135 = vld [vmem:[%s5 + $0xc] sm:$0xf]
  %v136 = vld [vmem:[%s5 + $0x10] sm:$0xf]
  %v137 = vld [vmem:[%s5 + $0x14] sm:$0xf]
  %v138 = vld [vmem:[%s5 + $0x18] sm:$0xf]
  %v139 = vld [vmem:[%s5 + $0x1c] sm:$0xf]
  %v140 = vld [vmem:[%s5 + $0x20] sm:$0xf]
  %v141 = vld [vmem:[%s5 + $0x24] sm:$0xf]
  %v142 = vld [vmem:[%s5 + $0x28] sm:$0xf]
  %v143 = vld [vmem:[%s5 + $0x2c] sm:$0xf]
  %v144 = vld [vmem:[%s5 + $0x30] sm:$0xf]
  %v145 = vld [vmem:[%s5 + $0x34] sm:$0xf]
  %v146 = vld [vmem:[%s5 + $0x38] sm:$0xf]
  %v147 = vld [vmem:[%s5 + $0x3c] sm:$0xf]
  %v148 = vld [vmem:[%s5 + $0x40] sm:$0xf]
  %v149 = vld [vmem:[%s5 + $0x44] sm:$0xf]
  %v150 = vld [vmem:[%s5 + $0x48] sm:$0xf]
  %v151 = vld [vmem:[%s5 + $0x4c] sm:$0xf]
  %v152 = vld [vmem:[%s5 + $0x50] sm:$0xf]
  %v153 = vld [vmem:[%s5 + $0x54] sm:$0xf]
  %v154 = vld [vmem:[%s5 + $0x58] sm:$0xf]
  %v155 = vld [vmem:[%s5 + $0x5c] sm:$0xf]
  %v156 = vld [vmem:[%s5 + $0x60] sm:$0xf]
  %v157 = vld [vmem:[%s5 + $0x64] sm:$0xf]
  %v158 = vld [vmem:[%s5 + $0x68] sm:$0xf]
  %v159 = vld [vmem:[%s5 + $0x6c] sm:$0xf]
  %v160 = vld [vmem:[%s5 + $0x70] sm:$0xf]
  %v161 = vld [vmem:[%s5 + $0x74] sm:$0xf]
  %v162 = vld [vmem:[%s5 + $0x78] sm:$0xf]
  %v163 = vld [vmem:[%s5 + $0x7c] sm:$0xf]
  %v164 = vld [vmem:[%s7] sm:$0x1]
  %v166 = vlaneseq
  %v167 = vshrl.u32 %v166, 7
  %v168 = vsub.s32 0, %v167
  %v169 = vrot.slane %v164, %v168
  %v173 = vunpack.c.l.b16 %v126
  %v174 = vunpack.c.h.b16 %v126
  %v175 = vunpack.c.l.b16 %v127
  %v176 = vunpack.c.h.b16 %v127
  %v177 = vpack.c.b16 %v175, %v173
  %v178 = vpack.c.b16 %v176, %v174
  %v213 = vunpack.c.l.b16 %v132
  %v214 = vunpack.c.l.b16 %v133
  %v215 = vunpack.c.l.b16 %v134
  %v216 = vunpack.c.l.b16 %v135
  %v217 = vunpack.c.l.b16 %v136
  %v218 = vunpack.c.l.b16 %v137
  %v219 = vunpack.c.l.b16 %v138
  %v220 = vunpack.c.l.b16 %v139
  %v221 = vunpack.c.l.b16 %v140
  %v222 = vunpack.c.l.b16 %v141
  %v223 = vunpack.c.l.b16 %v142
  %v224 = vunpack.c.l.b16 %v143
  %v225 = vunpack.c.l.b16 %v144
  %v226 = vunpack.c.l.b16 %v145
  %v227 = vunpack.c.l.b16 %v146
  %v228 = vunpack.c.l.b16 %v147
  %v229 = vunpack.c.l.b16 %v148
  %v230 = vunpack.c.l.b16 %v149
  %v231 = vunpack.c.l.b16 %v150
  %v232 = vunpack.c.l.b16 %v151
  %v233 = vunpack.c.l.b16 %v152
  %v234 = vunpack.c.l.b16 %v153
  %v235 = vunpack.c.l.b16 %v154
  %v236 = vunpack.c.l.b16 %v155
  %v237 = vunpack.c.l.b16 %v156
  %v238 = vunpack.c.l.b16 %v157
  %v239 = vunpack.c.l.b16 %v158
  %v240 = vunpack.c.l.b16 %v159
  %v241 = vunpack.c.l.b16 %v160
  %v242 = vunpack.c.l.b16 %v161
  %v243 = vunpack.c.l.b16 %v162
  %v244 = vunpack.c.l.b16 %v163
  %v245 = vpack.c.b16 %v214, %v213
  %v246 = vpack.c.b16 %v216, %v215
  %v247 = vpack.c.b16 %v218, %v217
  %v248 = vpack.c.b16 %v220, %v219
  %v249 = vpack.c.b16 %v222, %v221
  %v250 = vpack.c.b16 %v224, %v223
  %v251 = vpack.c.b16 %v226, %v225
  %v252 = vpack.c.b16 %v228, %v227
  %v253 = vpack.c.b16 %v230, %v229
  %v254 = vpack.c.b16 %v232, %v231
  %v255 = vpack.c.b16 %v234, %v233
  %v256 = vpack.c.b16 %v236, %v235
  %v257 = vpack.c.b16 %v238, %v237
  %v258 = vpack.c.b16 %v240, %v239
  %v259 = vpack.c.b16 %v242, %v241
  %v260 = vpack.c.b16 %v244, %v243
  %277 = vmatprep.subr.bf16.mxu0 0
  %278 = vmatpush1.bf16.msra.mxu0 %v245
  %279 = vmatprep.subr.bf16.mxu0 0
  %280 = vmatpush1.bf16.msra.mxu0 %v246
  %281 = vmatprep.subr.bf16.mxu0 0
  %282 = vmatpush1.bf16.msra.mxu0 %v247
  %283 = vmatprep.subr.bf16.mxu0 0
  %284 = vmatpush1.bf16.msra.mxu0 %v248
  %285 = vmatprep.subr.bf16.mxu0 0
  %286 = vmatpush1.bf16.msra.mxu0 %v249
  %287 = vmatprep.subr.bf16.mxu0 0
  %288 = vmatpush1.bf16.msra.mxu0 %v250
  %289 = vmatprep.subr.bf16.mxu0 0
  %290 = vmatpush1.bf16.msra.mxu0 %v251
  %291 = vmatprep.subr.bf16.mxu0 0
  %292 = vmatpush1.bf16.msra.mxu0 %v252
  %293 = vmatprep.subr.bf16.mxu0 0
  %294 = vmatpush1.bf16.msra.mxu0 %v253
  %295 = vmatprep.subr.bf16.mxu0 0
  %296 = vmatpush1.bf16.msra.mxu0 %v254
  %297 = vmatprep.subr.bf16.mxu0 0
  %298 = vmatpush1.bf16.msra.mxu0 %v255
  %299 = vmatprep.subr.bf16.mxu0 0
  %300 = vmatpush1.bf16.msra.mxu0 %v256
  %301 = vmatprep.subr.bf16.mxu0 0
  %302 = vmatpush1.bf16.msra.mxu0 %v257
  %303 = vmatprep.subr.bf16.mxu0 0
  %304 = vmatpush1.bf16.msra.mxu0 %v258
  %305 = vmatprep.subr.bf16.mxu0 0
  %306 = vmatpush1.bf16.msra.mxu0 %v259
  %307 = vmatprep.subr.bf16.mxu0 0
  %308 = vmatpush1.bf16.msra.mxu0 %v260
  %309 = vmatprep.mubr.bf16.mxu0 %v178
  %310 = vmatmul.mubr.bf16.gmra.mrb[0].mxu0 %v177
  %v311 = vpop.f32.mrb[0].mxu0
  %v312 = vadd.f32 %v169, %v311
  %v313 = vpop.f32.mrb[0].mxu0
  %v314 = vpop.f32.mrb[0].mxu0
  %v315 = vadd.f32 %v169, %v314
  %v316 = vpop.f32.mrb[0].mxu0
  %317 = vdwg.mxu0
  %v318 = vmax.f32 %v312, 0.0
  %v319 = vmax.f32 %v315, 0.0
  %v320 = vpack.c.bf16 %v319, %v318
  %v321 = vld [vmem:[%s9] sm:$0xf]
  %v322 = vld [vmem:[%s9 + $0x4] sm:$0xf]
  %v323 = vld [vmem:[%s9 + $0x8] sm:$0xf]
  %v324 = vld [vmem:[%s9 + $0xc] sm:$0xf]
  %v325 = vld [vmem:[%s9 + $0x10] sm:$0xf]
  %v326 = vld [vmem:[%s9 + $0x14] sm:$0xf]
  %v327 = vld [vmem:[%s9 + $0x18] sm:$0xf]
  %v328 = vld [vmem:[%s9 + $0x1c] sm:$0xf]
  %v329 = vld [vmem:[%s11] sm:$0x1]
  %v331 = vlaneseq
  %v332 = vshrl.u32 %v331, 7
  %v333 = vsub.s32 0, %v332
  %v334 = vrot.slane %v329, %v333
  %v344 = vunpack.c.l.b16 %v321
  %v345 = vunpack.c.l.b16 %v322
  %v346 = vunpack.c.l.b16 %v323
  %v347 = vunpack.c.l.b16 %v324
  %v348 = vunpack.c.l.b16 %v325
  %v349 = vunpack.c.l.b16 %v326
  %v350 = vunpack.c.l.b16 %v327
  %v351 = vunpack.c.l.b16 %v328
  %v352 = vpack.c.b16 %v345, %v344
  %v353 = vpack.c.b16 %v347, %v346
  %v354 = vpack.c.b16 %v349, %v348
  %v355 = vpack.c.b16 %v351, %v350
  %vm360 = vcmask 523264
  %v362 = vsel %vm360, %v320, 0
  %364 = vmatprep.subr.bf16.mxu0 0
  %365 = vmatpush1.bf16.msra.mxu0 %v352
  %366 = vmatprep.subr.bf16.mxu0 0
  %367 = vmatpush1.bf16.msra.mxu0 %v353
  %368 = vmatprep.subr.bf16.mxu0 0
  %369 = vmatpush1.bf16.msra.mxu0 %v354
  %370 = vmatprep.subr.bf16.mxu0 0
  %371 = vmatpush1.bf16.msra.mxu0 %v355
  %372 = vmatprep.subr.bf16.mxu0 0
  %373 = vmatpush1.bf16.msra.mxu0 0
  %374 = vmatprep.subr.bf16.mxu0 0
  %375 = vmatpush1.bf16.msra.mxu0 0
  %376 = vmatprep.subr.bf16.mxu0 0
  %377 = vmatpush1.bf16.msra.mxu0 0
  %378 = vmatprep.subr.bf16.mxu0 0
  %379 = vmatpush1.bf16.msra.mxu0 0
  %380 = vmatprep.subr.bf16.mxu0 0
  %381 = vmatpush1.bf16.msra.mxu0 0
  %382 = vmatprep.subr.bf16.mxu0 0
  %383 = vmatpush1.bf16.msra.mxu0 0
  %384 = vmatprep.subr.bf16.mxu0 0
  %385 = vmatpush1.bf16.msra.mxu0 0
  %386 = vmatprep.subr.bf16.mxu0 0
  %387 = vmatpush1.bf16.msra.mxu0 0
  %388 = vmatprep.subr.bf16.mxu0 0
  %389 = vmatpush1.bf16.msra.mxu0 0
  %390 = vmatprep.subr.bf16.mxu0 0
  %391 = vmatpush1.bf16.msra.mxu0 0
  %392 = vmatprep.subr.bf16.mxu0 0
  %393 = vmatpush1.bf16.msra.mxu0 0
  %394 = vmatprep.subr.bf16.mxu0 0
  %395 = vmatpush1.bf16.msra.mxu0 0
  %396 = vmatprep.mubr.bf16.mxu0 0
  %397 = vmatmul.mubr.bf16.gmra.mrb[0].mxu0 %v362
  %v398 = vpop.f32.mrb[0].mxu0
  %v399 = vadd.f32 %v334, %v398
  %v400 = vpop.f32.mrb[0].mxu0
  %v401 = vpop.f32.mrb[0].mxu0
  %v402 = vadd.f32 %v334, %v401
  %v403 = vpop.f32.mrb[0].mxu0
  %404 = vdwg.mxu0
  %v405 = vmax.f32 %v399, 0.0
  %v406 = vmax.f32 %v402, 0.0
  %v407 = vpack.c.bf16 %v406, %v405
  %v408 = vld [vmem:[%s13] sm:$0xf]
  %v409 = vld [vmem:[%s13 + $0x4] sm:$0xf]
  %v410 = vld [vmem:[%s13 + $0x8] sm:$0xf]
  %v411 = vld [vmem:[%s13 + $0xc] sm:$0xf]
  %v412 = vld [vmem:[%s13 + $0x10] sm:$0xf]
  %v413 = vld [vmem:[%s13 + $0x14] sm:$0xf]
  %v414 = vld [vmem:[%s13 + $0x18] sm:$0xf]
  %v415 = vld [vmem:[%s13 + $0x1c] sm:$0xf]
  %v416 = vld [vmem:[%s15] sm:$0x1]
  %v418 = vlaneseq
  %v419 = vshrl.u32 %v418, 7
  %v420 = vsub.s32 0, %v419
  %v421 = vrot.slane %v416, %v420
  %v431 = vunpack.c.l.b16 %v408
  %v432 = vunpack.c.l.b16 %v409
  %v433 = vunpack.c.l.b16 %v410
  %v434 = vunpack.c.l.b16 %v411
  %v435 = vunpack.c.l.b16 %v412
  %v436 = vunpack.c.l.b16 %v413
  %v437 = vunpack.c.l.b16 %v414
  %v438 = vunpack.c.l.b16 %v415
  %v439 = vpack.c.b16 %v432, %v431
  %v440 = vpack.c.b16 %v434, %v433
  %v441 = vpack.c.b16 %v436, %v435
  %v442 = vpack.c.b16 %v438, %v437
  %v448 = vsel %vm360, %v407, 0
  %450 = vmatprep.subr.bf16.mxu0 0
  %451 = vmatpush1.bf16.msra.mxu0 %v439
  %452 = vmatprep.subr.bf16.mxu0 0
  %453 = vmatpush1.bf16.msra.mxu0 %v440
  %454 = vmatprep.subr.bf16.mxu0 0
  %455 = vmatpush1.bf16.msra.mxu0 %v441
  %456 = vmatprep.subr.bf16.mxu0 0
  %457 = vmatpush1.bf16.msra.mxu0 %v442
  %458 = vmatprep.subr.bf16.mxu0 0
  %459 = vmatpush1.bf16.msra.mxu0 0
  %460 = vmatprep.subr.bf16.mxu0 0
  %461 = vmatpush1.bf16.msra.mxu0 0
  %462 = vmatprep.subr.bf16.mxu0 0
  %463 = vmatpush1.bf16.msra.mxu0 0
  %464 = vmatprep.subr.bf16.mxu0 0
  %465 = vmatpush1.bf16.msra.mxu0 0
  %466 = vmatprep.subr.bf16.mxu0 0
  %467 = vmatpush1.bf16.msra.mxu0 0
  %468 = vmatprep.subr.bf16.mxu0 0
  %469 = vmatpush1.bf16.msra.mxu0 0
  %470 = vmatprep.subr.bf16.mxu0 0
  %471 = vmatpush1.bf16.msra.mxu0 0
  %472 = vmatprep.subr.bf16.mxu0 0
  %473 = vmatpush1.bf16.msra.mxu0 0
  %474 = vmatprep.subr.bf16.mxu0 0
  %475 = vmatpush1.bf16.msra.mxu0 0
  %476 = vmatprep.subr.bf16.mxu0 0
  %477 = vmatpush1.bf16.msra.mxu0 0
  %478 = vmatprep.subr.bf16.mxu0 0
  %479 = vmatpush1.bf16.msra.mxu0 0
  %480 = vmatprep.subr.bf16.mxu0 0
  %481 = vmatpush1.bf16.msra.mxu0 0
  %482 = vmatprep.mubr.bf16.mxu0 0
  %483 = vmatmul.mubr.bf16.gmra.mrb[0].mxu0 %v448
  %v484 = vpop.f32.mrb[0].mxu0
  %v485 = vadd.f32 %v421, %v484
  %v486 = vpop.f32.mrb[0].mxu0
  %v487 = vpop.f32.mrb[0].mxu0
  %v488 = vadd.f32 %v421, %v487
  %v489 = vpop.f32.mrb[0].mxu0
  %490 = vdwg.mxu0
  %v491 = vadd.f32 %v485, 1e-06
  %v492 = vadd.f32 %v488, 1e-06
  %v493 = vld [vmem:[%s17] sm:$0xf]
  %v494 = vld [vmem:[%s17 + $0x4] sm:$0xf]
  %v495 = vld [vmem:[%s17 + $0x8] sm:$0xf]
  %v496 = vld [vmem:[%s17 + $0xc] sm:$0xf]
  %v497 = vld [vmem:[%s17 + $0x10] sm:$0xf]
  %v498 = vld [vmem:[%s17 + $0x14] sm:$0xf]
  %v499 = vld [vmem:[%s17 + $0x18] sm:$0xf]
  %v500 = vld [vmem:[%s17 + $0x1c] sm:$0xf]
  %v501 = vld [vmem:[%s19] sm:$0x1]
  %v503 = vlaneseq
  %v504 = vshrl.u32 %v503, 7
  %v505 = vsub.s32 0, %v504
  %v506 = vrot.slane %v501, %v505
  %v516 = vunpack.c.l.b16 %v493
  %v517 = vunpack.c.l.b16 %v494
  %v518 = vunpack.c.l.b16 %v495
  %v519 = vunpack.c.l.b16 %v496
  %v520 = vunpack.c.l.b16 %v497
  %v521 = vunpack.c.l.b16 %v498
  %v522 = vunpack.c.l.b16 %v499
  %v523 = vunpack.c.l.b16 %v500
  %v524 = vpack.c.b16 %v517, %v516
  %v525 = vpack.c.b16 %v519, %v518
  %v526 = vpack.c.b16 %v521, %v520
  %v527 = vpack.c.b16 %v523, %v522
  %532 = vmatprep.subr.bf16.mxu0 0
  %533 = vmatpush1.bf16.msra.mxu0 %v524
  %534 = vmatprep.subr.bf16.mxu0 0
  %535 = vmatpush1.bf16.msra.mxu0 %v525
  %536 = vmatprep.subr.bf16.mxu0 0
  %537 = vmatpush1.bf16.msra.mxu0 %v526
  %538 = vmatprep.subr.bf16.mxu0 0
  %539 = vmatpush1.bf16.msra.mxu0 %v527
  %540 = vmatprep.subr.bf16.mxu0 0
  %541 = vmatpush1.bf16.msra.mxu0 0
  %542 = vmatprep.subr.bf16.mxu0 0
  %543 = vmatpush1.bf16.msra.mxu0 0
  %544 = vmatprep.subr.bf16.mxu0 0
  %545 = vmatpush1.bf16.msra.mxu0 0
  %546 = vmatprep.subr.bf16.mxu0 0
  %547 = vmatpush1.bf16.msra.mxu0 0
  %548 = vmatprep.subr.bf16.mxu0 0
  %549 = vmatpush1.bf16.msra.mxu0 0
  %550 = vmatprep.subr.bf16.mxu0 0
  %551 = vmatpush1.bf16.msra.mxu0 0
  %552 = vmatprep.subr.bf16.mxu0 0
  %553 = vmatpush1.bf16.msra.mxu0 0
  %554 = vmatprep.subr.bf16.mxu0 0
  %555 = vmatpush1.bf16.msra.mxu0 0
  %556 = vmatprep.subr.bf16.mxu0 0
  %557 = vmatpush1.bf16.msra.mxu0 0
  %558 = vmatprep.subr.bf16.mxu0 0
  %559 = vmatpush1.bf16.msra.mxu0 0
  %560 = vmatprep.subr.bf16.mxu0 0
  %561 = vmatpush1.bf16.msra.mxu0 0
  %562 = vmatprep.subr.bf16.mxu0 0
  %563 = vmatpush1.bf16.msra.mxu0 0
  %564 = vmatprep.mubr.bf16.mxu0 0
  %565 = vmatmul.mubr.bf16.gmra.mrb[0].mxu0 %v448
  %v566 = vpop.f32.mrb[0].mxu0
  %v567 = vadd.f32 %v506, %v566
  %v568 = vpop.f32.mrb[0].mxu0
  %v569 = vpop.f32.mrb[0].mxu0
  %v570 = vadd.f32 %v506, %v569
  %v571 = vpop.f32.mrb[0].mxu0
  %572 = vdwg.mxu0
  %v573 = vadd.f32 %v567, 1e-06
  %v574 = vadd.f32 %v570, 1e-06
  %v575 = vmul.f32 %v573, -0.5
  %v576 = vmul.f32 %v574, -0.5
  %v577 = vmul.f32 %v573, 1.442695
  %v578 = vpow.pop %v577
  %v579 = vmul.f32 %v574, 1.442695
  %v580 = vpow.pop %v579
  %v581 = vmul.f32 %v491, %v491
  %v582 = vmul.f32 %v492, %v492
  %v583 = vadd.f32 %v578, %v581
  %v584 = vadd.f32 %v580, %v582
  %v585 = vmul.f32 %v583, 0.5
  %v586 = vmul.f32 %v584, 0.5
  %v587 = vadd.f32 %v575, %v585
  %v588 = vadd.f32 %v576, %v586
  %v589 = vsub.f32 %v587, 0.5
  %v590 = vsub.f32 %v588, 0.5
  %vm591 = vcmask 130048
  %v592 = vsel %vm591, %v589, 0.0
  %593 = vadd.xlane.f32.xlu0 %v592
  %v594 = vpop.xlane.xlu0 %593
  %v595 = vsel %vm591, %v590, 0.0
  %596 = vadd.xlane.f32.xlu0 %v595
  %v597 = vpop.xlane.xlu0 %596
  %v598 = vld [vmem:[%s57] sm:$0xff]
  %v599 = vld [vmem:[%s57 + $0x8] sm:$0xff]
  %v600 = vmul.f32 %v573, 0.5
  %v601 = vmul.f32 %v574, 0.5
  %v602 = vmul.f32 %v600, 1.442695
  %v603 = vpow.pop %v602
  %v604 = vmul.f32 %v601, 1.442695
  %v605 = vpow.pop %v604
  %v606 = vmul.f32 %v598, %v603
  %v607 = vmul.f32 %v599, %v605
  %v608 = vadd.f32 %v491, %v606
  %v609 = vadd.f32 %v492, %v607
  %v610 = vld [vmem:[%s21] sm:$0xff]
  %v611 = vld [vmem:[%s21 + $0x8] sm:$0xff]
  %v612 = vld [vmem:[%s25] sm:$0xff]
  %v613 = vld [vmem:[%s25 + $0x8] sm:$0xff]
  %v614 = vld [vmem:[%s23] sm:$0xff]
  %v615 = vld [vmem:[%s23 + $0x8] sm:$0xff]
  %v616 = vmul.f32 %v614, 1.442695
  %v617 = vpow.pop %v616
  %v618 = vmul.f32 %v615, 1.442695
  %v619 = vpow.pop %v618
  %v620 = vmul.f32 %v612, %v617
  %v621 = vmul.f32 %v613, %v619
  %v622 = vadd.f32 %v610, %v620
  %v623 = vadd.f32 %v611, %v621
  %v624 = vpack.c.bf16 %v623, %v622
  %v625 = vld [vmem:[%s27] sm:$0x1]
  %v626 = vld [vmem:[%s31] sm:$0x1]
  %v627 = vld [vmem:[%s29] sm:$0x1]
  %v628 = vmul.f32 %v627, 1.442695
  %v629 = vpow.pop %v628
  %v630 = vmul.f32 %v626, %v629
  %v631 = vadd.f32 %v625, %v630
  %v632 = vld [vmem:[%s33] sm:$0xff]
  %v633 = vld [vmem:[%s33 + $0x8] sm:$0xff]
  %v634 = vld [vmem:[%s33 + $0x10] sm:$0xff]
  %v635 = vld [vmem:[%s33 + $0x18] sm:$0xff]
  %v636 = vld [vmem:[%s33 + $0x20] sm:$0xff]
  %v637 = vld [vmem:[%s33 + $0x28] sm:$0xff]
  %v638 = vld [vmem:[%s33 + $0x30] sm:$0xff]
  %v639 = vld [vmem:[%s33 + $0x38] sm:$0xff]
  %v640 = vld [vmem:[%s37] sm:$0xff]
  %v641 = vld [vmem:[%s37 + $0x8] sm:$0xff]
  %v642 = vld [vmem:[%s37 + $0x10] sm:$0xff]
  %v643 = vld [vmem:[%s37 + $0x18] sm:$0xff]
  %v644 = vld [vmem:[%s37 + $0x20] sm:$0xff]
  %v645 = vld [vmem:[%s37 + $0x28] sm:$0xff]
  %v646 = vld [vmem:[%s37 + $0x30] sm:$0xff]
  %v647 = vld [vmem:[%s37 + $0x38] sm:$0xff]
  %v648 = vld [vmem:[%s35] sm:$0xff]
  %v649 = vld [vmem:[%s35 + $0x8] sm:$0xff]
  %v650 = vld [vmem:[%s35 + $0x10] sm:$0xff]
  %v651 = vld [vmem:[%s35 + $0x18] sm:$0xff]
  %v652 = vld [vmem:[%s35 + $0x20] sm:$0xff]
  %v653 = vld [vmem:[%s35 + $0x28] sm:$0xff]
  %v654 = vld [vmem:[%s35 + $0x30] sm:$0xff]
  %v655 = vld [vmem:[%s35 + $0x38] sm:$0xff]
  %v656 = vmul.f32 %v648, 1.442695
  %v657 = vpow.pop %v656
  %v658 = vmul.f32 %v649, 1.442695
  %v659 = vpow.pop %v658
  %v660 = vmul.f32 %v650, 1.442695
  %v661 = vpow.pop %v660
  %v662 = vmul.f32 %v651, 1.442695
  %v663 = vpow.pop %v662
  %v664 = vmul.f32 %v652, 1.442695
  %v665 = vpow.pop %v664
  %v666 = vmul.f32 %v653, 1.442695
  %v667 = vpow.pop %v666
  %v668 = vmul.f32 %v654, 1.442695
  %v669 = vpow.pop %v668
  %v670 = vmul.f32 %v655, 1.442695
  %v671 = vpow.pop %v670
  %v672 = vmul.f32 %v640, %v657
  %v673 = vmul.f32 %v641, %v659
  %v674 = vmul.f32 %v642, %v661
  %v675 = vmul.f32 %v643, %v663
  %v676 = vmul.f32 %v644, %v665
  %v677 = vmul.f32 %v645, %v667
  %v678 = vmul.f32 %v646, %v669
  %v679 = vmul.f32 %v647, %v671
  %v680 = vadd.f32 %v632, %v672
  %v681 = vadd.f32 %v633, %v673
  %v682 = vadd.f32 %v634, %v674
  %v683 = vadd.f32 %v635, %v675
  %v684 = vadd.f32 %v636, %v676
  %v685 = vadd.f32 %v637, %v677
  %v686 = vadd.f32 %v638, %v678
  %v687 = vadd.f32 %v639, %v679
  %v688 = vpack.c.bf16 %v681, %v680
  %v689 = vpack.c.bf16 %v683, %v682
  %v690 = vpack.c.bf16 %v685, %v684
  %v691 = vpack.c.bf16 %v687, %v686
  %v692 = vld [vmem:[%s39] sm:$0x1]
  %v693 = vld [vmem:[%s43] sm:$0x1]
  %v694 = vld [vmem:[%s41] sm:$0x1]
  %v695 = vmul.f32 %v694, 1.442695
  %v696 = vpow.pop %v695
  %v697 = vmul.f32 %v693, %v696
  %v698 = vadd.f32 %v692, %v697
  %v699 = vld [vmem:[%s45] sm:$0xff]
  %v700 = vld [vmem:[%s45 + $0x8] sm:$0xff]
  %v701 = vld [vmem:[%s45 + $0x10] sm:$0xff]
  %v702 = vld [vmem:[%s45 + $0x18] sm:$0xff]
  %v703 = vld [vmem:[%s45 + $0x20] sm:$0xff]
  %v704 = vld [vmem:[%s45 + $0x28] sm:$0xff]
  %v705 = vld [vmem:[%s45 + $0x30] sm:$0xff]
  %v706 = vld [vmem:[%s45 + $0x38] sm:$0xff]
  %v707 = vld [vmem:[%s45 + $0x40] sm:$0xff]
  %v708 = vld [vmem:[%s45 + $0x48] sm:$0xff]
  %v709 = vld [vmem:[%s45 + $0x50] sm:$0xff]
  %v710 = vld [vmem:[%s45 + $0x58] sm:$0xff]
  %v711 = vld [vmem:[%s45 + $0x60] sm:$0xff]
  %v712 = vld [vmem:[%s45 + $0x68] sm:$0xff]
  %v713 = vld [vmem:[%s45 + $0x70] sm:$0xff]
  %v714 = vld [vmem:[%s45 + $0x78] sm:$0xff]
  %v715 = vld [vmem:[%s49] sm:$0xff]
  %v716 = vld [vmem:[%s49 + $0x8] sm:$0xff]
  %v717 = vld [vmem:[%s49 + $0x10] sm:$0xff]
  %v718 = vld [vmem:[%s49 + $0x18] sm:$0xff]
  %v719 = vld [vmem:[%s49 + $0x20] sm:$0xff]
  %v720 = vld [vmem:[%s49 + $0x28] sm:$0xff]
  %v721 = vld [vmem:[%s49 + $0x30] sm:$0xff]
  %v722 = vld [vmem:[%s49 + $0x38] sm:$0xff]
  %v723 = vld [vmem:[%s49 + $0x40] sm:$0xff]
  %v724 = vld [vmem:[%s49 + $0x48] sm:$0xff]
  %v725 = vld [vmem:[%s49 + $0x50] sm:$0xff]
  %v726 = vld [vmem:[%s49 + $0x58] sm:$0xff]
  %v727 = vld [vmem:[%s49 + $0x60] sm:$0xff]
  %v728 = vld [vmem:[%s49 + $0x68] sm:$0xff]
  %v729 = vld [vmem:[%s49 + $0x70] sm:$0xff]
  %v730 = vld [vmem:[%s49 + $0x78] sm:$0xff]
  %v731 = vld [vmem:[%s47] sm:$0xff]
  %v732 = vld [vmem:[%s47 + $0x8] sm:$0xff]
  %v733 = vld [vmem:[%s47 + $0x10] sm:$0xff]
  %v734 = vld [vmem:[%s47 + $0x18] sm:$0xff]
  %v735 = vld [vmem:[%s47 + $0x20] sm:$0xff]
  %v736 = vld [vmem:[%s47 + $0x28] sm:$0xff]
  %v737 = vld [vmem:[%s47 + $0x30] sm:$0xff]
  %v738 = vld [vmem:[%s47 + $0x38] sm:$0xff]
  %v739 = vld [vmem:[%s47 + $0x40] sm:$0xff]
  %v740 = vld [vmem:[%s47 + $0x48] sm:$0xff]
  %v741 = vld [vmem:[%s47 + $0x50] sm:$0xff]
  %v742 = vld [vmem:[%s47 + $0x58] sm:$0xff]
  %v743 = vld [vmem:[%s47 + $0x60] sm:$0xff]
  %v744 = vld [vmem:[%s47 + $0x68] sm:$0xff]
  %v745 = vld [vmem:[%s47 + $0x70] sm:$0xff]
  %v746 = vld [vmem:[%s47 + $0x78] sm:$0xff]
  %v747 = vmul.f32 %v731, 1.442695
  %v748 = vpow.pop %v747
  %v749 = vmul.f32 %v732, 1.442695
  %v750 = vpow.pop %v749
  %v751 = vmul.f32 %v733, 1.442695
  %v752 = vpow.pop %v751
  %v753 = vmul.f32 %v734, 1.442695
  %v754 = vpow.pop %v753
  %v755 = vmul.f32 %v735, 1.442695
  %v756 = vpow.pop %v755
  %v757 = vmul.f32 %v736, 1.442695
  %v758 = vpow.pop %v757
  %v759 = vmul.f32 %v737, 1.442695
  %v760 = vpow.pop %v759
  %v761 = vmul.f32 %v738, 1.442695
  %v762 = vpow.pop %v761
  %v763 = vmul.f32 %v739, 1.442695
  %v764 = vpow.pop %v763
  %v765 = vmul.f32 %v740, 1.442695
  %v766 = vpow.pop %v765
  %v767 = vmul.f32 %v741, 1.442695
  %v768 = vpow.pop %v767
  %v769 = vmul.f32 %v742, 1.442695
  %v770 = vpow.pop %v769
  %v771 = vmul.f32 %v743, 1.442695
  %v772 = vpow.pop %v771
  %v773 = vmul.f32 %v744, 1.442695
  %v774 = vpow.pop %v773
  %v775 = vmul.f32 %v745, 1.442695
  %v776 = vpow.pop %v775
  %v777 = vmul.f32 %v746, 1.442695
  %v778 = vpow.pop %v777
  %v779 = vmul.f32 %v715, %v748
  %v780 = vmul.f32 %v716, %v750
  %v781 = vmul.f32 %v717, %v752
  %v782 = vmul.f32 %v718, %v754
  %v783 = vmul.f32 %v719, %v756
  %v784 = vmul.f32 %v720, %v758
  %v785 = vmul.f32 %v721, %v760
  %v786 = vmul.f32 %v722, %v762
  %v787 = vmul.f32 %v723, %v764
  %v788 = vmul.f32 %v724, %v766
  %v789 = vmul.f32 %v725, %v768
  %v790 = vmul.f32 %v726, %v770
  %v791 = vmul.f32 %v727, %v772
  %v792 = vmul.f32 %v728, %v774
  %v793 = vmul.f32 %v729, %v776
  %v794 = vmul.f32 %v730, %v778
  %v795 = vadd.f32 %v699, %v779
  %v796 = vadd.f32 %v700, %v780
  %v797 = vadd.f32 %v701, %v781
  %v798 = vadd.f32 %v702, %v782
  %v799 = vadd.f32 %v703, %v783
  %v800 = vadd.f32 %v704, %v784
  %v801 = vadd.f32 %v705, %v785
  %v802 = vadd.f32 %v706, %v786
  %v803 = vadd.f32 %v707, %v787
  %v804 = vadd.f32 %v708, %v788
  %v805 = vadd.f32 %v709, %v789
  %v806 = vadd.f32 %v710, %v790
  %v807 = vadd.f32 %v711, %v791
  %v808 = vadd.f32 %v712, %v792
  %v809 = vadd.f32 %v713, %v793
  %v810 = vadd.f32 %v714, %v794
  %v811 = vpack.c.bf16 %v797, %v795
  %v812 = vpack.c.bf16 %v798, %v796
  %v813 = vpack.c.bf16 %v801, %v799
  %v814 = vpack.c.bf16 %v802, %v800
  %v815 = vpack.c.bf16 %v805, %v803
  %v816 = vpack.c.bf16 %v806, %v804
  %v817 = vpack.c.bf16 %v809, %v807
  %v818 = vpack.c.bf16 %v810, %v808
  %v819 = vld [vmem:[%s51] sm:$0x3]
  %v820 = vld [vmem:[%s55] sm:$0x3]
  %v821 = vld [vmem:[%s53] sm:$0x3]
  %v822 = vmul.f32 %v821, 1.442695
  %v823 = vpow.pop %v822
  %v824 = vmul.f32 %v820, %v823
  %v825 = vadd.f32 %v819, %v824
  %v826 = vpack.c.bf16 %v609, %v608
  %v827 = vpack.c.bf16 %v492, %v491
  %v829 = vlaneseq
  %v830 = vshrl.u32 %v829, 7
  %v831 = vsub.s32 0, %v830
  %v832 = vrot.slane %v631, %v831
  %v835 = vsel %vm591, %v826, 0
  %v838 = vsel %vm591, %v827, 0
  %840 = vmatprep.subr.bf16.mxu0 0
  %841 = vmatpush1.bf16.msra.mxu0 %v624
  %842 = vmatprep.subr.bf16.mxu0 0
  %843 = vmatpush1.bf16.msra.mxu0 0
  %844 = vmatprep.subr.bf16.mxu0 0
  %845 = vmatpush1.bf16.msra.mxu0 0
  %846 = vmatprep.subr.bf16.mxu0 0
  %847 = vmatpush1.bf16.msra.mxu0 0
  %848 = vmatprep.subr.bf16.mxu0 0
  %849 = vmatpush1.bf16.msra.mxu0 0
  %850 = vmatprep.subr.bf16.mxu0 0
  %851 = vmatpush1.bf16.msra.mxu0 0
  %852 = vmatprep.subr.bf16.mxu0 0
  %853 = vmatpush1.bf16.msra.mxu0 0
  %854 = vmatprep.subr.bf16.mxu0 0
  %855 = vmatpush1.bf16.msra.mxu0 0
  %856 = vmatprep.subr.bf16.mxu0 0
  %857 = vmatpush1.bf16.msra.mxu0 0
  %858 = vmatprep.subr.bf16.mxu0 0
  %859 = vmatpush1.bf16.msra.mxu0 0
  %860 = vmatprep.subr.bf16.mxu0 0
  %861 = vmatpush1.bf16.msra.mxu0 0
  %862 = vmatprep.subr.bf16.mxu0 0
  %863 = vmatpush1.bf16.msra.mxu0 0
  %864 = vmatprep.subr.bf16.mxu0 0
  %865 = vmatpush1.bf16.msra.mxu0 0
  %866 = vmatprep.subr.bf16.mxu0 0
  %867 = vmatpush1.bf16.msra.mxu0 0
  %868 = vmatprep.subr.bf16.mxu0 0
  %869 = vmatpush1.bf16.msra.mxu0 0
  %870 = vmatprep.subr.bf16.mxu0 0
  %871 = vmatpush1.bf16.msra.mxu0 0
  %872 = vmatprep.mubr.bf16.mxu0 0
  %873 = vmatmul.mubr.bf16.gmra.mrb[0].mxu0 %v835
  %v874 = vpop.f32.mrb[0].mxu0
  %v875 = vadd.f32 %v832, %v874
  %v876 = vpop.f32.mrb[0].mxu0
  %v877 = vpop.f32.mrb[0].mxu0
  %v878 = vadd.f32 %v832, %v877
  %v879 = vpop.f32.mrb[0].mxu0
  %880 = vmatprep.mubr.bf16.mxu0 0
  %881 = vmatmul.mubr.bf16.gmra.mrb[0].mxu0 %v838
  %v882 = vpop.f32.mrb[0].mxu0
  %v883 = vadd.f32 %v832, %v882
  %v884 = vpop.f32.mrb[0].mxu0
  %v885 = vpop.f32.mrb[0].mxu0
  %v886 = vadd.f32 %v832, %v885
  %v887 = vpop.f32.mrb[0].mxu0
  %888 = vdwg.mxu0
  %v889 = vmax.f32 %v875, 0.0
  %v890 = vmax.f32 %v878, 0.0
  %v891 = vmax.f32 %v883, 0.0
  %v892 = vmax.f32 %v886, 0.0
  %v893 = vpack.c.bf16 %v890, %v889
  %v894 = vpack.c.bf16 %v892, %v891
  %v896 = vlaneseq
  %v897 = vshrl.u32 %v896, 7
  %v898 = vsub.s32 0, %v897
  %v899 = vrot.slane %v698, %v898
  %v902 = vsel %vm360, %v893, 0
  %v905 = vsel %vm360, %v894, 0
  %907 = vmatprep.subr.bf16.mxu0 0
  %908 = vmatpush1.bf16.msra.mxu0 %v688
  %909 = vmatprep.subr.bf16.mxu0 0
  %910 = vmatpush1.bf16.msra.mxu0 %v689
  %911 = vmatprep.subr.bf16.mxu0 0
  %912 = vmatpush1.bf16.msra.mxu0 %v690
  %913 = vmatprep.subr.bf16.mxu0 0
  %914 = vmatpush1.bf16.msra.mxu0 %v691
  %915 = vmatprep.subr.bf16.mxu0 0
  %916 = vmatpush1.bf16.msra.mxu0 0
  %917 = vmatprep.subr.bf16.mxu0 0
  %918 = vmatpush1.bf16.msra.mxu0 0
  %919 = vmatprep.subr.bf16.mxu0 0
  %920 = vmatpush1.bf16.msra.mxu0 0
  %921 = vmatprep.subr.bf16.mxu0 0
  %922 = vmatpush1.bf16.msra.mxu0 0
  %923 = vmatprep.subr.bf16.mxu0 0
  %924 = vmatpush1.bf16.msra.mxu0 0
  %925 = vmatprep.subr.bf16.mxu0 0
  %926 = vmatpush1.bf16.msra.mxu0 0
  %927 = vmatprep.subr.bf16.mxu0 0
  %928 = vmatpush1.bf16.msra.mxu0 0
  %929 = vmatprep.subr.bf16.mxu0 0
  %930 = vmatpush1.bf16.msra.mxu0 0
  %931 = vmatprep.subr.bf16.mxu0 0
  %932 = vmatpush1.bf16.msra.mxu0 0
  %933 = vmatprep.subr.bf16.mxu0 0
  %934 = vmatpush1.bf16.msra.mxu0 0
  %935 = vmatprep.subr.bf16.mxu0 0
  %936 = vmatpush1.bf16.msra.mxu0 0
  %937 = vmatprep.subr.bf16.mxu0 0
  %938 = vmatpush1.bf16.msra.mxu0 0
  %939 = vmatprep.mubr.bf16.mxu0 0
  %940 = vmatmul.mubr.bf16.gmra.mrb[0].mxu0 %v902
  %v941 = vpop.f32.mrb[0].mxu0
  %v942 = vadd.f32 %v899, %v941
  %v943 = vpop.f32.mrb[0].mxu0
  %v944 = vpop.f32.mrb[0].mxu0
  %v945 = vadd.f32 %v899, %v944
  %v946 = vpop.f32.mrb[0].mxu0
  %947 = vmatprep.mubr.bf16.mxu0 0
  %948 = vmatmul.mubr.bf16.gmra.mrb[0].mxu0 %v905
  %v949 = vpop.f32.mrb[0].mxu0
  %v950 = vadd.f32 %v899, %v949
  %v951 = vpop.f32.mrb[0].mxu0
  %v952 = vpop.f32.mrb[0].mxu0
  %v953 = vadd.f32 %v899, %v952
  %v954 = vpop.f32.mrb[0].mxu0
  %955 = vdwg.mxu0
  %v956 = vxor.u32 %v942, 2147483648
  %v957 = vxor.u32 %v945, 2147483648
  %v958 = vxor.u32 %v950, 2147483648
  %v959 = vxor.u32 %v953, 2147483648
  %v960 = vmul.f32 %v956, 1.442695
  %v961 = vpow.pop %v960
  %v962 = vmul.f32 %v957, 1.442695
  %v963 = vpow.pop %v962
  %v964 = vmul.f32 %v958, 1.442695
  %v965 = vpow.pop %v964
  %v966 = vmul.f32 %v959, 1.442695
  %v967 = vpow.pop %v966
  %v968 = vadd.f32 %v961, 1.0
  %v969 = vadd.f32 %v963, 1.0
  %v970 = vadd.f32 %v965, 1.0
  %v971 = vadd.f32 %v967, 1.0
  %v972 = vrcp.pop %v968
  %v973 = vmul.f32 1.0, %v972
  %v974 = vrcp.pop %v969
  %v975 = vmul.f32 1.0, %v974
  %v976 = vrcp.pop %v970
  %v977 = vmul.f32 1.0, %v976
  %v978 = vrcp.pop %v971
  %v979 = vmul.f32 1.0, %v978
  %v980 = vpack.c.bf16 %v975, %v973
  %v981 = vpack.c.bf16 %v979, %v977
  %v983 = vlaneseq
  %v984 = vshrl.u32 %v983, 7
  %v985 = vsub.s32 0, %v984
  %v986 = vrot.slane %v825, %v985
  %v987 = vlaneseq
  %v988 = vshrl.u32 %v987, 7
  %v989 = vsub.s32 1, %v988
  %v990 = vrot.slane %v825, %v989
  %v994 = vsel %vm360, %v980, 0
  %v997 = vsel %vm360, %v981, 0
  %999 = vmatprep.subr.bf16.mxu0 %v812
  %1000 = vmatpush1.bf16.msra.mxu0 %v811
  %1001 = vmatprep.subr.bf16.mxu0 %v814
  %1002 = vmatpush1.bf16.msra.mxu0 %v813
  %1003 = vmatprep.subr.bf16.mxu0 %v816
  %1004 = vmatpush1.bf16.msra.mxu0 %v815
  %1005 = vmatprep.subr.bf16.mxu0 %v818
  %1006 = vmatpush1.bf16.msra.mxu0 %v817
  %1007 = vmatprep.subr.bf16.mxu0 0
  %1008 = vmatpush1.bf16.msra.mxu0 0
  %1009 = vmatprep.subr.bf16.mxu0 0
  %1010 = vmatpush1.bf16.msra.mxu0 0
  %1011 = vmatprep.subr.bf16.mxu0 0
  %1012 = vmatpush1.bf16.msra.mxu0 0
  %1013 = vmatprep.subr.bf16.mxu0 0
  %1014 = vmatpush1.bf16.msra.mxu0 0
  %1015 = vmatprep.subr.bf16.mxu0 0
  %1016 = vmatpush1.bf16.msra.mxu0 0
  %1017 = vmatprep.subr.bf16.mxu0 0
  %1018 = vmatpush1.bf16.msra.mxu0 0
  %1019 = vmatprep.subr.bf16.mxu0 0
  %1020 = vmatpush1.bf16.msra.mxu0 0
  %1021 = vmatprep.subr.bf16.mxu0 0
  %1022 = vmatpush1.bf16.msra.mxu0 0
  %1023 = vmatprep.subr.bf16.mxu0 0
  %1024 = vmatpush1.bf16.msra.mxu0 0
  %1025 = vmatprep.subr.bf16.mxu0 0
  %1026 = vmatpush1.bf16.msra.mxu0 0
  %1027 = vmatprep.subr.bf16.mxu0 0
  %1028 = vmatpush1.bf16.msra.mxu0 0
  %1029 = vmatprep.subr.bf16.mxu0 0
  %1030 = vmatpush1.bf16.msra.mxu0 0
  %1031 = vmatprep.mubr.bf16.mxu0 0
  %1032 = vmatmul.mubr.bf16.gmra.mrb[0].mxu0 %v994
  %v1033 = vpop.f32.mrb[0].mxu0
  %v1034 = vadd.f32 %v986, %v1033
  %v1035 = vpop.f32.mrb[0].mxu0
  %v1036 = vadd.f32 %v990, %v1035
  %v1037 = vpop.f32.mrb[0].mxu0
  %v1038 = vadd.f32 %v986, %v1037
  %v1039 = vpop.f32.mrb[0].mxu0
  %v1040 = vadd.f32 %v990, %v1039
  %1041 = vmatprep.mubr.bf16.mxu0 0
  %1042 = vmatmul.mubr.bf16.gmra.mrb[0].mxu0 %v997
  %v1043 = vpop.f32.mrb[0].mxu0
  %v1044 = vadd.f32 %v986, %v1043
  %v1045 = vpop.f32.mrb[0].mxu0
  %v1046 = vadd.f32 %v990, %v1045
  %v1047 = vpop.f32.mrb[0].mxu0
  %v1048 = vadd.f32 %v986, %v1047
  %v1049 = vpop.f32.mrb[0].mxu0
  %v1050 = vadd.f32 %v990, %v1049
  %1051 = vdwg.mxu0
  %v1052 = vld [vmem:[%s3] sm:$0x3]
  %v1054 = vlaneseq
  %v1055 = vshrl.u32 %v1054, 7
  %v1056 = vsub.s32 0, %v1055
  %v1057 = vrot.slane %v1052, %v1056
  %v1058 = vlaneseq
  %v1059 = vshrl.u32 %v1058, 7
  %v1060 = vsub.s32 1, %v1059
  %v1061 = vrot.slane %v1052, %v1060
  %v1064 = vadd.f32 %v1034, %v1057
  %v1065 = vadd.f32 %v1036, %v1061
  %v1066 = vadd.f32 %v1038, %v1057
  %v1067 = vadd.f32 %v1040, %v1061
  %v1068 = vadd.f32 %v1044, %v1057
  %v1069 = vadd.f32 %v1046, %v1061
  %v1070 = vadd.f32 %v1048, %v1057
  %v1071 = vadd.f32 %v1050, %v1061
  %v1072 = vmul.f32 %v128, %v1064
  %v1073 = vmul.f32 %v129, %v1065
  %v1074 = vmul.f32 %v130, %v1066
  %v1075 = vmul.f32 %v131, %v1067
  %v1076 = vadd.f32 %v1072, %v1073
  %1077 = vadd.xlane.f32.xlu0 %v1076
  %v1078 = vpop.xlane.xlu0 %1077
  %v1079 = vadd.f32 %v1074, %v1075
  %1080 = vadd.xlane.f32.xlu0 %v1079
  %v1081 = vpop.xlane.xlu0 %1080
  %vm1082 = vcmask 261120
  %v1083 = vsel %vm1082, %v1064, -inf
  %1084 = vmax.xlane.f32.xlu0 %v1083
  %v1085 = vpop.xlane.xlu0 %1084
  %v1086 = vsel %vm1082, %v1066, -inf
  %1087 = vmax.xlane.f32.xlu0 %v1086
  %v1088 = vpop.xlane.xlu0 %1087
  %v1089 = vsub.f32 %v1064, %v1085
  %v1090 = vsub.f32 %v1066, %v1088
  %v1091 = vmul.f32 %v1089, 1.442695
  %v1092 = vpow.pop %v1091
  %v1093 = vmul.f32 %v1090, 1.442695
  %v1094 = vpow.pop %v1093
  %v1095 = vsel %vm1082, %v1092, 0.0
  %1096 = vadd.xlane.f32.xlu0 %v1095
  %v1097 = vpop.xlane.xlu0 %1096
  %v1098 = vsel %vm1082, %v1094, 0.0
  %1099 = vadd.xlane.f32.xlu0 %v1098
  %v1100 = vpop.xlane.xlu0 %1099
  %v1101 = vlog2.pop %v1097
  %v1102 = vmul.f32 %v1101, 0.6931472
  %v1103 = vlog2.pop %v1100
  %v1104 = vmul.f32 %v1103, 0.6931472
  %v1105 = vadd.f32 %v1102, %v1085
  %v1106 = vadd.f32 %v1104, %v1088
  %v1107 = vsub.f32 %v1064, %v1105
  %v1108 = vsub.f32 %v1066, %v1106
  %v1109 = vadd.f32 %v1105, 0.0
  %v1110 = vadd.f32 %v1106, 0.0
  %v1111 = vsel %vm1082, %v1068, -inf
  %1112 = vmax.xlane.f32.xlu0 %v1111
  %v1113 = vpop.xlane.xlu0 %1112
  %v1114 = vsel %vm1082, %v1070, -inf
  %1115 = vmax.xlane.f32.xlu0 %v1114
  %v1116 = vpop.xlane.xlu0 %1115
  %v1117 = vmul.f32 %v128, %v1068
  %v1118 = vmul.f32 %v130, %v1070
  %v1119 = vsel %vm1082, %v1117, 0.0
  %1120 = vadd.xlane.f32.xlu0 %v1119
  %v1121 = vpop.xlane.xlu0 %1120
  %v1122 = vsel %vm1082, %v1118, 0.0
  %1123 = vadd.xlane.f32.xlu0 %v1122
  %v1124 = vpop.xlane.xlu0 %1123
  %vm1125 = vcmp.ge.f32.partialorder %v1121, %v1113
  %vm1126 = vcmp.ge.f32.partialorder %v1124, %v1116
  %v1127 = vsel %vm1125, 1, 0
  %v1128 = vsel %vm1126, 1, 0
  %v1129 = vcvt.s32.f32 %v1127
  %v1130 = vcvt.s32.f32 %v1128
  %v1131 = vadd.f32 %v1129, 0.0
  %v1132 = vadd.f32 %v1130, 0.0
  %vm1133 = vcmask 523520
  %v1134 = vsel %vm1133, %v1064, -inf
  %1135 = vmax.xlane.f32.xlu0 %v1134
  %v1136 = vpop.xlane.xlu0 %1135
  %v1137 = vsel %vm1133, %v1066, -inf
  %1138 = vmax.xlane.f32.xlu0 %v1137
  %v1139 = vpop.xlane.xlu0 %1138
  %v1140 = vsub.f32 %v1064, %v1136
  %v1141 = vsub.f32 %v1066, %v1139
  %v1142 = vmul.f32 %v1140, 1.442695
  %v1143 = vpow.pop %v1142
  %v1144 = vmul.f32 %v1141, 1.442695
  %v1145 = vpow.pop %v1144
  %1148 = vrot.lane.b32.xlu0 %v1143, 96
  %v1149 = vpop.permute.xlu0 %1148
  %1150 = vrot.lane.b32.xlu0 %v1145, 96
  %v1151 = vpop.permute.xlu0 %1150
  %v1154 = vsel %vm1082, %v1149, 0.0
  %1155 = vadd.xlane.f32.xlu0 %v1154
  %v1156 = vpop.xlane.xlu0 %1155
  %v1157 = vsel %vm1082, %v1151, 0.0
  %1158 = vadd.xlane.f32.xlu0 %v1157
  %v1159 = vpop.xlane.xlu0 %1158
  %v1160 = vlog2.pop %v1156
  %v1161 = vmul.f32 %v1160, 0.6931472
  %v1162 = vlog2.pop %v1159
  %v1163 = vmul.f32 %v1162, 0.6931472
  %v1164 = vadd.f32 %v1161, %v1136
  %v1165 = vadd.f32 %v1163, %v1139
  %v1166 = vsub.f32 %v1064, %v1164
  %v1167 = vsub.f32 %v1066, %v1165
  %v1168 = vadd.f32 %v1109, %v1164
  %v1169 = vadd.f32 %v1110, %v1165
  %v1170 = vsel %vm1133, %v1068, -inf
  %1171 = vmax.xlane.f32.xlu0 %v1170
  %v1172 = vpop.xlane.xlu0 %1171
  %v1173 = vsel %vm1133, %v1070, -inf
  %1174 = vmax.xlane.f32.xlu0 %v1173
  %v1175 = vpop.xlane.xlu0 %1174
  %1178 = vrot.lane.b32.xlu0 %v1117, 96
  %v1179 = vpop.permute.xlu0 %1178
  %1180 = vrot.lane.b32.xlu0 %v1118, 96
  %v1181 = vpop.permute.xlu0 %1180
  %v1184 = vsel %vm1082, %v1179, 0.0
  %1185 = vadd.xlane.f32.xlu0 %v1184
  %v1186 = vpop.xlane.xlu0 %1185
  %v1187 = vsel %vm1082, %v1181, 0.0
  %1188 = vadd.xlane.f32.xlu0 %v1187
  %v1189 = vpop.xlane.xlu0 %1188
  %vm1190 = vcmp.ge.f32.partialorder %v1186, %v1172
  %vm1191 = vcmp.ge.f32.partialorder %v1189, %v1175
  %v1192 = vsel %vm1190, 1, 0
  %v1193 = vsel %vm1191, 1, 0
  %v1194 = vcvt.s32.f32 %v1192
  %v1195 = vcvt.s32.f32 %v1193
  %v1196 = vadd.f32 %v1131, %v1194
  %v1197 = vadd.f32 %v1132, %v1195
  %vm1198 = vcmask 785920
  %v1199 = vsel %vm1198, %v1064, -inf
  %1200 = vmax.xlane.f32.xlu0 %v1199
  %v1201 = vpop.xlane.xlu0 %1200
  %v1202 = vsel %vm1198, %v1066, -inf
  %1203 = vmax.xlane.f32.xlu0 %v1202
  %v1204 = vpop.xlane.xlu0 %1203
  %v1205 = vsub.f32 %v1064, %v1201
  %v1206 = vsub.f32 %v1066, %v1204
  %v1207 = vmul.f32 %v1205, 1.442695
  %v1208 = vpow.pop %v1207
  %v1209 = vmul.f32 %v1206, 1.442695
  %v1210 = vpow.pop %v1209
  %1213 = vrot.lane.b32.xlu0 %v1208, 64
  %v1214 = vpop.permute.xlu0 %1213
  %1215 = vrot.lane.b32.xlu0 %v1210, 64
  %v1216 = vpop.permute.xlu0 %1215
  %v1219 = vsel %vm1082, %v1214, 0.0
  %1220 = vadd.xlane.f32.xlu0 %v1219
  %v1221 = vpop.xlane.xlu0 %1220
  %v1222 = vsel %vm1082, %v1216, 0.0
  %1223 = vadd.xlane.f32.xlu0 %v1222
  %v1224 = vpop.xlane.xlu0 %1223
  %v1225 = vlog2.pop %v1221
  %v1226 = vmul.f32 %v1225, 0.6931472
  %v1227 = vlog2.pop %v1224
  %v1228 = vmul.f32 %v1227, 0.6931472
  %v1229 = vadd.f32 %v1226, %v1201
  %v1230 = vadd.f32 %v1228, %v1204
  %v1231 = vsub.f32 %v1064, %v1229
  %v1232 = vsub.f32 %v1066, %v1230
  %v1233 = vadd.f32 %v1168, %v1229
  %v1234 = vadd.f32 %v1169, %v1230
  %v1235 = vsel %vm1198, %v1068, -inf
  %1236 = vmax.xlane.f32.xlu0 %v1235
  %v1237 = vpop.xlane.xlu0 %1236
  %v1238 = vsel %vm1198, %v1070, -inf
  %1239 = vmax.xlane.f32.xlu0 %v1238
  %v1240 = vpop.xlane.xlu0 %1239
  %1241 = vrot.lane.b32.xlu0 %v1117, 64
  %v1242 = vpop.permute.xlu0 %1241
  %1243 = vrot.lane.b32.xlu0 %v1118, 64
  %v1244 = vpop.permute.xlu0 %1243
  %v1247 = vsel %vm1082, %v1242, 0.0
  %1248 = vadd.xlane.f32.xlu0 %v1247
  %v1249 = vpop.xlane.xlu0 %1248
  %v1250 = vsel %vm1082, %v1244, 0.0
  %1251 = vadd.xlane.f32.xlu0 %v1250
  %v1252 = vpop.xlane.xlu0 %1251
  %vm1253 = vcmp.ge.f32.partialorder %v1249, %v1237
  %vm1254 = vcmp.ge.f32.partialorder %v1252, %v1240
  %v1255 = vsel %vm1253, 1, 0
  %v1256 = vsel %vm1254, 1, 0
  %v1257 = vcvt.s32.f32 %v1255
  %v1258 = vcvt.s32.f32 %v1256
  %v1259 = vadd.f32 %v1196, %v1257
  %v1260 = vadd.f32 %v1197, %v1258
  %vm1261 = vcmask 1048320
  %v1262 = vsel %vm1261, %v1064, -inf
  %1263 = vmax.xlane.f32.xlu0 %v1262
  %v1264 = vpop.xlane.xlu0 %1263
  %v1265 = vsel %vm1261, %v1066, -inf
  %1266 = vmax.xlane.f32.xlu0 %v1265
  %v1267 = vpop.xlane.xlu0 %1266
  %v1268 = vsub.f32 %v1064, %v1264
  %v1269 = vsub.f32 %v1066, %v1267
  %v1270 = vmul.f32 %v1268, 1.442695
  %v1271 = vpow.pop %v1270
  %v1272 = vmul.f32 %v1269, 1.442695
  %v1273 = vpow.pop %v1272
  %1276 = vrot.lane.b32.xlu0 %v1271, 32
  %v1277 = vpop.permute.xlu0 %1276
  %1278 = vrot.lane.b32.xlu0 %v1273, 32
  %v1279 = vpop.permute.xlu0 %1278
  %v1282 = vsel %vm1082, %v1277, 0.0
  %1283 = vadd.xlane.f32.xlu0 %v1282
  %v1284 = vpop.xlane.xlu0 %1283
  %v1285 = vsel %vm1082, %v1279, 0.0
  %1286 = vadd.xlane.f32.xlu0 %v1285
  %v1287 = vpop.xlane.xlu0 %1286
  %v1288 = vlog2.pop %v1284
  %v1289 = vmul.f32 %v1288, 0.6931472
  %v1290 = vlog2.pop %v1287
  %v1291 = vmul.f32 %v1290, 0.6931472
  %v1292 = vadd.f32 %v1289, %v1264
  %v1293 = vadd.f32 %v1291, %v1267
  %v1294 = vsub.f32 %v1064, %v1292
  %v1295 = vsub.f32 %v1066, %v1293
  %v1296 = vadd.f32 %v1233, %v1292
  %v1297 = vadd.f32 %v1234, %v1293
  %v1298 = vsel %vm1261, %v1068, -inf
  %1299 = vmax.xlane.f32.xlu0 %v1298
  %v1300 = vpop.xlane.xlu0 %1299
  %v1301 = vsel %vm1261, %v1070, -inf
  %1302 = vmax.xlane.f32.xlu0 %v1301
  %v1303 = vpop.xlane.xlu0 %1302
  %1304 = vrot.lane.b32.xlu0 %v1117, 32
  %v1305 = vpop.permute.xlu0 %1304
  %1306 = vrot.lane.b32.xlu0 %v1118, 32
  %v1307 = vpop.permute.xlu0 %1306
  %v1310 = vsel %vm1082, %v1305, 0.0
  %1311 = vadd.xlane.f32.xlu0 %v1310
  %v1312 = vpop.xlane.xlu0 %1311
  %v1313 = vsel %vm1082, %v1307, 0.0
  %1314 = vadd.xlane.f32.xlu0 %v1313
  %v1315 = vpop.xlane.xlu0 %1314
  %vm1316 = vcmp.ge.f32.partialorder %v1312, %v1300
  %vm1317 = vcmp.ge.f32.partialorder %v1315, %v1303
  %v1318 = vsel %vm1316, 1, 0
  %v1319 = vsel %vm1317, 1, 0
  %v1320 = vcvt.s32.f32 %v1318
  %v1321 = vcvt.s32.f32 %v1319
  %v1322 = vadd.f32 %v1259, %v1320
  %v1323 = vadd.f32 %v1260, %v1321
  %v1324 = vsel %vm1082, %v1065, -inf
  %1325 = vmax.xlane.f32.xlu0 %v1324
  %v1326 = vpop.xlane.xlu0 %1325
  %v1327 = vsel %vm1082, %v1067, -inf
  %1328 = vmax.xlane.f32.xlu0 %v1327
  %v1329 = vpop.xlane.xlu0 %1328
  %v1330 = vsub.f32 %v1065, %v1326
  %v1331 = vsub.f32 %v1067, %v1329
  %v1332 = vmul.f32 %v1330, 1.442695
  %v1333 = vpow.pop %v1332
  %v1334 = vmul.f32 %v1331, 1.442695
  %v1335 = vpow.pop %v1334
  %v1336 = vsel %vm1082, %v1333, 0.0
  %1337 = vadd.xlane.f32.xlu0 %v1336
  %v1338 = vpop.xlane.xlu0 %1337
  %v1339 = vsel %vm1082, %v1335, 0.0
  %1340 = vadd.xlane.f32.xlu0 %v1339
  %v1341 = vpop.xlane.xlu0 %1340
  %v1342 = vlog2.pop %v1338
  %v1343 = vmul.f32 %v1342, 0.6931472
  %v1344 = vlog2.pop %v1341
  %v1345 = vmul.f32 %v1344, 0.6931472
  %v1346 = vadd.f32 %v1343, %v1326
  %v1347 = vadd.f32 %v1345, %v1329
  %v1348 = vsub.f32 %v1065, %v1346
  %v1349 = vsub.f32 %v1067, %v1347
  %v1350 = vadd.f32 %v1296, %v1346
  %v1351 = vadd.f32 %v1297, %v1347
  %v1352 = vsel %vm1082, %v1069, -inf
  %1353 = vmax.xlane.f32.xlu0 %v1352
  %v1354 = vpop.xlane.xlu0 %1353
  %v1355 = vsel %vm1082, %v1071, -inf
  %1356 = vmax.xlane.f32.xlu0 %v1355
  %v1357 = vpop.xlane.xlu0 %1356
  %v1358 = vmul.f32 %v129, %v1069
  %v1359 = vmul.f32 %v131, %v1071
  %v1360 = vsel %vm1082, %v1358, 0.0
  %1361 = vadd.xlane.f32.xlu0 %v1360
  %v1362 = vpop.xlane.xlu0 %1361
  %v1363 = vsel %vm1082, %v1359, 0.0
  %1364 = vadd.xlane.f32.xlu0 %v1363
  %v1365 = vpop.xlane.xlu0 %1364
  %vm1366 = vcmp.ge.f32.partialorder %v1362, %v1354
  %vm1367 = vcmp.ge.f32.partialorder %v1365, %v1357
  %v1368 = vsel %vm1366, 1, 0
  %v1369 = vsel %vm1367, 1, 0
  %v1370 = vcvt.s32.f32 %v1368
  %v1371 = vcvt.s32.f32 %v1369
  %v1372 = vadd.f32 %v1322, %v1370
  %v1373 = vadd.f32 %v1323, %v1371
  %v1374 = vsel %vm1133, %v1065, -inf
  %1375 = vmax.xlane.f32.xlu0 %v1374
  %v1376 = vpop.xlane.xlu0 %1375
  %v1377 = vsel %vm1133, %v1067, -inf
  %1378 = vmax.xlane.f32.xlu0 %v1377
  %v1379 = vpop.xlane.xlu0 %1378
  %v1380 = vsub.f32 %v1065, %v1376
  %v1381 = vsub.f32 %v1067, %v1379
  %v1382 = vmul.f32 %v1380, 1.442695
  %v1383 = vpow.pop %v1382
  %v1384 = vmul.f32 %v1381, 1.442695
  %v1385 = vpow.pop %v1384
  %1388 = vrot.lane.b32.xlu0 %v1383, 96
  %v1389 = vpop.permute.xlu0 %1388
  %1390 = vrot.lane.b32.xlu0 %v1385, 96
  %v1391 = vpop.permute.xlu0 %1390
  %v1394 = vsel %vm1082, %v1389, 0.0
  %1395 = vadd.xlane.f32.xlu0 %v1394
  %v1396 = vpop.xlane.xlu0 %1395
  %v1397 = vsel %vm1082, %v1391, 0.0
  %1398 = vadd.xlane.f32.xlu0 %v1397
  %v1399 = vpop.xlane.xlu0 %1398
  %v1400 = vlog2.pop %v1396
  %v1401 = vmul.f32 %v1400, 0.6931472
  %v1402 = vlog2.pop %v1399
  %v1403 = vmul.f32 %v1402, 0.6931472
  %v1404 = vadd.f32 %v1401, %v1376
  %v1405 = vadd.f32 %v1403, %v1379
  %v1406 = vsub.f32 %v1065, %v1404
  %v1407 = vsub.f32 %v1067, %v1405
  %v1408 = vadd.f32 %v1350, %v1404
  %v1409 = vadd.f32 %v1351, %v1405
  %v1410 = vsel %vm1133, %v1069, -inf
  %1411 = vmax.xlane.f32.xlu0 %v1410
  %v1412 = vpop.xlane.xlu0 %1411
  %v1413 = vsel %vm1133, %v1071, -inf
  %1414 = vmax.xlane.f32.xlu0 %v1413
  %v1415 = vpop.xlane.xlu0 %1414
  %1418 = vrot.lane.b32.xlu0 %v1358, 96
  %v1419 = vpop.permute.xlu0 %1418
  %1420 = vrot.lane.b32.xlu0 %v1359, 96
  %v1421 = vpop.permute.xlu0 %1420
  %v1424 = vsel %vm1082, %v1419, 0.0
  %1425 = vadd.xlane.f32.xlu0 %v1424
  %v1426 = vpop.xlane.xlu0 %1425
  %v1427 = vsel %vm1082, %v1421, 0.0
  %1428 = vadd.xlane.f32.xlu0 %v1427
  %v1429 = vpop.xlane.xlu0 %1428
  %vm1430 = vcmp.ge.f32.partialorder %v1426, %v1412
  %vm1431 = vcmp.ge.f32.partialorder %v1429, %v1415
  %v1432 = vsel %vm1430, 1, 0
  %v1433 = vsel %vm1431, 1, 0
  %v1434 = vcvt.s32.f32 %v1432
  %v1435 = vcvt.s32.f32 %v1433
  %v1436 = vadd.f32 %v1372, %v1434
  %v1437 = vadd.f32 %v1373, %v1435
  %v1438 = vsel %vm1198, %v1065, -inf
  %1439 = vmax.xlane.f32.xlu0 %v1438
  %v1440 = vpop.xlane.xlu0 %1439
  %v1441 = vsel %vm1198, %v1067, -inf
  %1442 = vmax.xlane.f32.xlu0 %v1441
  %v1443 = vpop.xlane.xlu0 %1442
  %v1444 = vsub.f32 %v1065, %v1440
  %v1445 = vsub.f32 %v1067, %v1443
  %v1446 = vmul.f32 %v1444, 1.442695
  %v1447 = vpow.pop %v1446
  %v1448 = vmul.f32 %v1445, 1.442695
  %v1449 = vpow.pop %v1448
  %1452 = vrot.lane.b32.xlu0 %v1447, 64
  %v1453 = vpop.permute.xlu0 %1452
  %1454 = vrot.lane.b32.xlu0 %v1449, 64
  %v1455 = vpop.permute.xlu0 %1454
  %v1458 = vsel %vm1082, %v1453, 0.0
  %1459 = vadd.xlane.f32.xlu0 %v1458
  %v1460 = vpop.xlane.xlu0 %1459
  %v1461 = vsel %vm1082, %v1455, 0.0
  %1462 = vadd.xlane.f32.xlu0 %v1461
  %v1463 = vpop.xlane.xlu0 %1462
  %v1464 = vlog2.pop %v1460
  %v1465 = vmul.f32 %v1464, 0.6931472
  %v1466 = vlog2.pop %v1463
  %v1467 = vmul.f32 %v1466, 0.6931472
  %v1468 = vadd.f32 %v1465, %v1440
  %v1469 = vadd.f32 %v1467, %v1443
  %v1470 = vsub.f32 %v1065, %v1468
  %v1471 = vsub.f32 %v1067, %v1469
  %v1472 = vadd.f32 %v1408, %v1468
  %v1473 = vadd.f32 %v1409, %v1469
  %v1474 = vsel %vm1198, %v1069, -inf
  %1475 = vmax.xlane.f32.xlu0 %v1474
  %v1476 = vpop.xlane.xlu0 %1475
  %v1477 = vsel %vm1198, %v1071, -inf
  %1478 = vmax.xlane.f32.xlu0 %v1477
  %v1479 = vpop.xlane.xlu0 %1478
  %1480 = vrot.lane.b32.xlu0 %v1358, 64
  %v1481 = vpop.permute.xlu0 %1480
  %1482 = vrot.lane.b32.xlu0 %v1359, 64
  %v1483 = vpop.permute.xlu0 %1482
  %v1486 = vsel %vm1082, %v1481, 0.0
  %1487 = vadd.xlane.f32.xlu0 %v1486
  %v1488 = vpop.xlane.xlu0 %1487
  %v1489 = vsel %vm1082, %v1483, 0.0
  %1490 = vadd.xlane.f32.xlu0 %v1489
  %v1491 = vpop.xlane.xlu0 %1490
  %vm1492 = vcmp.ge.f32.partialorder %v1488, %v1476
  %vm1493 = vcmp.ge.f32.partialorder %v1491, %v1479
  %v1494 = vsel %vm1492, 1, 0
  %v1495 = vsel %vm1493, 1, 0
  %v1496 = vcvt.s32.f32 %v1494
  %v1497 = vcvt.s32.f32 %v1495
  %v1498 = vadd.f32 %v1436, %v1496
  %v1499 = vadd.f32 %v1437, %v1497
  %v1500 = vsel %vm1261, %v1065, -inf
  %1501 = vmax.xlane.f32.xlu0 %v1500
  %v1502 = vpop.xlane.xlu0 %1501
  %v1503 = vsel %vm1261, %v1067, -inf
  %1504 = vmax.xlane.f32.xlu0 %v1503
  %v1505 = vpop.xlane.xlu0 %1504
  %v1506 = vsub.f32 %v1065, %v1502
  %v1507 = vsub.f32 %v1067, %v1505
  %v1508 = vmul.f32 %v1506, 1.442695
  %v1509 = vpow.pop %v1508
  %v1510 = vmul.f32 %v1507, 1.442695
  %v1511 = vpow.pop %v1510
  %1514 = vrot.lane.b32.xlu0 %v1509, 32
  %v1515 = vpop.permute.xlu0 %1514
  %1516 = vrot.lane.b32.xlu0 %v1511, 32
  %v1517 = vpop.permute.xlu0 %1516
  %v1520 = vsel %vm1082, %v1515, 0.0
  %1521 = vadd.xlane.f32.xlu0 %v1520
  %v1522 = vpop.xlane.xlu0 %1521
  %v1523 = vsel %vm1082, %v1517, 0.0
  %1524 = vadd.xlane.f32.xlu0 %v1523
  %v1525 = vpop.xlane.xlu0 %1524
  %v1526 = vlog2.pop %v1522
  %v1527 = vmul.f32 %v1526, 0.6931472
  %v1528 = vlog2.pop %v1525
  %v1529 = vmul.f32 %v1528, 0.6931472
  %v1530 = vadd.f32 %v1527, %v1502
  %v1531 = vadd.f32 %v1529, %v1505
  %v1532 = vsub.f32 %v1065, %v1530
  %v1533 = vsub.f32 %v1067, %v1531
  %v1534 = vadd.f32 %v1472, %v1530
  %v1535 = vadd.f32 %v1473, %v1531
  %v1536 = vsel %vm1261, %v1069, -inf
  %1537 = vmax.xlane.f32.xlu0 %v1536
  %v1538 = vpop.xlane.xlu0 %1537
  %v1539 = vsel %vm1261, %v1071, -inf
  %1540 = vmax.xlane.f32.xlu0 %v1539
  %v1541 = vpop.xlane.xlu0 %1540
  %1542 = vrot.lane.b32.xlu0 %v1358, 32
  %v1543 = vpop.permute.xlu0 %1542
  %1544 = vrot.lane.b32.xlu0 %v1359, 32
  %v1545 = vpop.permute.xlu0 %1544
  %v1548 = vsel %vm1082, %v1543, 0.0
  %1549 = vadd.xlane.f32.xlu0 %v1548
  %v1550 = vpop.xlane.xlu0 %1549
  %v1551 = vsel %vm1082, %v1545, 0.0
  %1552 = vadd.xlane.f32.xlu0 %v1551
  %v1553 = vpop.xlane.xlu0 %1552
  %vm1554 = vcmp.ge.f32.partialorder %v1550, %v1538
  %vm1555 = vcmp.ge.f32.partialorder %v1553, %v1541
  %v1556 = vsel %vm1554, 1, 0
  %v1557 = vsel %vm1555, 1, 0
  %v1558 = vcvt.s32.f32 %v1556
  %v1559 = vcvt.s32.f32 %v1557
  %v1560 = vadd.f32 %v1498, %v1558
  %v1561 = vadd.f32 %v1499, %v1559
  %v1562 = vsel %vm1082, %v1107, %v1166
  %v1563 = vsel %vm1082, %v1108, %v1167
  %v1564 = vsel %vm360, %v1562, %v1231
  %v1565 = vsel %vm360, %v1563, %v1232
  %vm1566 = vcmask 785408
  %v1567 = vsel %vm1566, %v1564, %v1294
  %v1568 = vsel %vm1566, %v1565, %v1295
  %v1569 = vsel %vm1082, %v1348, %v1406
  %v1570 = vsel %vm1082, %v1349, %v1407
  %v1571 = vsel %vm360, %v1569, %v1470
  %v1572 = vsel %vm360, %v1570, %v1471
  %v1573 = vsel %vm1566, %v1571, %v1532
  %v1574 = vsel %vm1566, %v1572, %v1533
  %1575 = vst [vmem:[%s59] sm:$0xff] %v1567
  %1576 = vst [vmem:[%s59 + $0x8] sm:$0xff] %v1573
  %1577 = vst [vmem:[%s59 + $0x10] sm:$0xff] %v1568
  %1578 = vst [vmem:[%s59 + $0x18] sm:$0xff] %v1574
  %v1579 = vsub.f32 %v1534, %v1078
  %v1580 = vsub.f32 %v1535, %v1081
  %v1581 = vld [vmem:[%s21] sm:$0xff]
  %v1582 = vld [vmem:[%s21 + $0x8] sm:$0xff]
  %v1583 = vld [vmem:[%s23] sm:$0xff]
  %v1584 = vld [vmem:[%s23 + $0x8] sm:$0xff]
  %v1585 = vmul.f32 %v1583, 0.5
  %v1586 = vmul.f32 %v1584, 0.5
  %v1587 = vsub.f32 -0.5, %v1585
  %v1588 = vsub.f32 -0.5, %v1586
  %v1589 = vmul.f32 %v1581, 0.5
  %v1590 = vmul.f32 %v1582, 0.5
  %v1591 = vmul.f32 %v1589, %v1581
  %v1592 = vmul.f32 %v1590, %v1582
  %v1593 = vadd.f32 %v1587, %v1591
  %v1594 = vadd.f32 %v1588, %v1592
  %v1595 = vmul.f32 %v1583, 1.442695
  %v1596 = vpow.pop %v1595
  %v1597 = vmul.f32 %v1584, 1.442695
  %v1598 = vpow.pop %v1597
  %v1599 = vmul.f32 %v1596, 0.5
  %v1600 = vmul.f32 %v1598, 0.5
  %v1601 = vadd.f32 %v1593, %v1599
  %v1602 = vadd.f32 %v1594, %v1600
  %v1603 = vsel %vm360, %v1601, 0.0
  %v1604 = vsel %vm360, %v1602, 0.0
  %v1605 = vadd.f32 %v1603, %v1604
  %1606 = vadd.xlane.f32.xlu0 %v1605
  %v1607 = vpop.xlane.xlu0 %1606
  %v1608 = vrot.slane %v1607, 4
  %v1609 = vadd.f32 %v1607, %v1608
  %v1610 = vrot.slane %v1609, 2
  %v1611 = vadd.f32 %v1609, %v1610
  %v1612 = vrot.slane %v1611, 1
  %v1613 = vadd.f32 %v1611, %v1612
  %s1614 = vtos %v1613
  %v1615 = vld [vmem:[%s27] sm:$0x1]
  %v1616 = vld [vmem:[%s29] sm:$0x1]
  %v1617 = vmul.f32 %v1616, 0.5
  %v1618 = vsub.f32 -0.5, %v1617
  %v1619 = vmul.f32 %v1615, 0.5
  %v1620 = vmul.f32 %v1619, %v1615
  %v1621 = vadd.f32 %v1618, %v1620
  %v1622 = vmul.f32 %v1616, 1.442695
  %v1623 = vpow.pop %v1622
  %v1624 = vmul.f32 %v1623, 0.5
  %v1625 = vadd.f32 %v1621, %v1624
  %vm1626 = vcmask 516096
  %v1627 = vsel %vm1626, %v1625, 0.0
  %1628 = vadd.xlane.f32.xlu0 %v1627
  %v1629 = vpop.xlane.xlu0 %1628
  %v1630 = vrot.slane %v1629, 4
  %v1631 = vadd.f32 %v1629, %v1630
  %v1632 = vrot.slane %v1631, 2
  %v1633 = vadd.f32 %v1631, %v1632
  %v1634 = vrot.slane %v1633, 1
  %v1635 = vadd.f32 %v1633, %v1634
  %s1636 = vtos %v1635
  %s1637 = sadd.f32 %s1614, %s1636
  %v1638 = vld [vmem:[%s33] sm:$0xff]
  %v1639 = vld [vmem:[%s33 + $0x8] sm:$0xff]
  %v1640 = vld [vmem:[%s33 + $0x10] sm:$0xff]
  %v1641 = vld [vmem:[%s33 + $0x18] sm:$0xff]
  %v1642 = vld [vmem:[%s33 + $0x20] sm:$0xff]
  %v1643 = vld [vmem:[%s33 + $0x28] sm:$0xff]
  %v1644 = vld [vmem:[%s33 + $0x30] sm:$0xff]
  %v1645 = vld [vmem:[%s33 + $0x38] sm:$0xff]
  %v1646 = vld [vmem:[%s35] sm:$0xff]
  %v1647 = vld [vmem:[%s35 + $0x8] sm:$0xff]
  %v1648 = vld [vmem:[%s35 + $0x10] sm:$0xff]
  %v1649 = vld [vmem:[%s35 + $0x18] sm:$0xff]
  %v1650 = vld [vmem:[%s35 + $0x20] sm:$0xff]
  %v1651 = vld [vmem:[%s35 + $0x28] sm:$0xff]
  %v1652 = vld [vmem:[%s35 + $0x30] sm:$0xff]
  %v1653 = vld [vmem:[%s35 + $0x38] sm:$0xff]
  %v1654 = vmul.f32 %v1646, 0.5
  %v1655 = vmul.f32 %v1647, 0.5
  %v1656 = vmul.f32 %v1648, 0.5
  %v1657 = vmul.f32 %v1649, 0.5
  %v1658 = vmul.f32 %v1650, 0.5
  %v1659 = vmul.f32 %v1651, 0.5
  %v1660 = vmul.f32 %v1652, 0.5
  %v1661 = vmul.f32 %v1653, 0.5
  %v1662 = vsub.f32 -0.5, %v1654
  %v1663 = vsub.f32 -0.5, %v1655
  %v1664 = vsub.f32 -0.5, %v1656
  %v1665 = vsub.f32 -0.5, %v1657
  %v1666 = vsub.f32 -0.5, %v1658
  %v1667 = vsub.f32 -0.5, %v1659
  %v1668 = vsub.f32 -0.5, %v1660
  %v1669 = vsub.f32 -0.5, %v1661
  %v1670 = vmul.f32 %v1638, 0.5
  %v1671 = vmul.f32 %v1639, 0.5
  %v1672 = vmul.f32 %v1640, 0.5
  %v1673 = vmul.f32 %v1641, 0.5
  %v1674 = vmul.f32 %v1642, 0.5
  %v1675 = vmul.f32 %v1643, 0.5
  %v1676 = vmul.f32 %v1644, 0.5
  %v1677 = vmul.f32 %v1645, 0.5
  %v1678 = vmul.f32 %v1670, %v1638
  %v1679 = vmul.f32 %v1671, %v1639
  %v1680 = vmul.f32 %v1672, %v1640
  %v1681 = vmul.f32 %v1673, %v1641
  %v1682 = vmul.f32 %v1674, %v1642
  %v1683 = vmul.f32 %v1675, %v1643
  %v1684 = vmul.f32 %v1676, %v1644
  %v1685 = vmul.f32 %v1677, %v1645
  %v1686 = vadd.f32 %v1662, %v1678
  %v1687 = vadd.f32 %v1663, %v1679
  %v1688 = vadd.f32 %v1664, %v1680
  %v1689 = vadd.f32 %v1665, %v1681
  %v1690 = vadd.f32 %v1666, %v1682
  %v1691 = vadd.f32 %v1667, %v1683
  %v1692 = vadd.f32 %v1668, %v1684
  %v1693 = vadd.f32 %v1669, %v1685
  %v1694 = vmul.f32 %v1646, 1.442695
  %v1695 = vpow.pop %v1694
  %v1696 = vmul.f32 %v1647, 1.442695
  %v1697 = vpow.pop %v1696
  %v1698 = vmul.f32 %v1648, 1.442695
  %v1699 = vpow.pop %v1698
  %v1700 = vmul.f32 %v1649, 1.442695
  %v1701 = vpow.pop %v1700
  %v1702 = vmul.f32 %v1650, 1.442695
  %v1703 = vpow.pop %v1702
  %v1704 = vmul.f32 %v1651, 1.442695
  %v1705 = vpow.pop %v1704
  %v1706 = vmul.f32 %v1652, 1.442695
  %v1707 = vpow.pop %v1706
  %v1708 = vmul.f32 %v1653, 1.442695
  %v1709 = vpow.pop %v1708
  %v1710 = vmul.f32 %v1695, 0.5
  %v1711 = vmul.f32 %v1697, 0.5
  %v1712 = vmul.f32 %v1699, 0.5
  %v1713 = vmul.f32 %v1701, 0.5
  %v1714 = vmul.f32 %v1703, 0.5
  %v1715 = vmul.f32 %v1705, 0.5
  %v1716 = vmul.f32 %v1707, 0.5
  %v1717 = vmul.f32 %v1709, 0.5
  %v1718 = vadd.f32 %v1686, %v1710
  %v1719 = vadd.f32 %v1687, %v1711
  %v1720 = vadd.f32 %v1688, %v1712
  %v1721 = vadd.f32 %v1689, %v1713
  %v1722 = vadd.f32 %v1690, %v1714
  %v1723 = vadd.f32 %v1691, %v1715
  %v1724 = vadd.f32 %v1692, %v1716
  %v1725 = vadd.f32 %v1693, %v1717
  %v1726 = vsel %vm360, %v1718, 0.0
  %v1727 = vsel %vm360, %v1719, 0.0
  %v1728 = vadd.f32 %v1726, %v1727
  %v1729 = vsel %vm360, %v1720, 0.0
  %v1730 = vadd.f32 %v1728, %v1729
  %v1731 = vsel %vm360, %v1721, 0.0
  %v1732 = vadd.f32 %v1730, %v1731
  %v1733 = vsel %vm360, %v1722, 0.0
  %v1734 = vadd.f32 %v1732, %v1733
  %v1735 = vsel %vm360, %v1723, 0.0
  %v1736 = vadd.f32 %v1734, %v1735
  %v1737 = vsel %vm360, %v1724, 0.0
  %v1738 = vadd.f32 %v1736, %v1737
  %v1739 = vsel %vm360, %v1725, 0.0
  %v1740 = vadd.f32 %v1738, %v1739
  %1741 = vadd.xlane.f32.xlu0 %v1740
  %v1742 = vpop.xlane.xlu0 %1741
  %v1743 = vrot.slane %v1742, 4
  %v1744 = vadd.f32 %v1742, %v1743
  %v1745 = vrot.slane %v1744, 2
  %v1746 = vadd.f32 %v1744, %v1745
  %v1747 = vrot.slane %v1746, 1
  %v1748 = vadd.f32 %v1746, %v1747
  %s1749 = vtos %v1748
  %s1750 = sadd.f32 %s1637, %s1749
  %v1751 = vld [vmem:[%s39] sm:$0x1]
  %v1752 = vld [vmem:[%s41] sm:$0x1]
  %v1753 = vmul.f32 %v1752, 0.5
  %v1754 = vsub.f32 -0.5, %v1753
  %v1755 = vmul.f32 %v1751, 0.5
  %v1756 = vmul.f32 %v1755, %v1751
  %v1757 = vadd.f32 %v1754, %v1756
  %v1758 = vmul.f32 %v1752, 1.442695
  %v1759 = vpow.pop %v1758
  %v1760 = vmul.f32 %v1759, 0.5
  %v1761 = vadd.f32 %v1757, %v1760
  %v1762 = vsel %vm1626, %v1761, 0.0
  %1763 = vadd.xlane.f32.xlu0 %v1762
  %v1764 = vpop.xlane.xlu0 %1763
  %v1765 = vrot.slane %v1764, 4
  %v1766 = vadd.f32 %v1764, %v1765
  %v1767 = vrot.slane %v1766, 2
  %v1768 = vadd.f32 %v1766, %v1767
  %v1769 = vrot.slane %v1768, 1
  %v1770 = vadd.f32 %v1768, %v1769
  %s1771 = vtos %v1770
  %s1772 = sadd.f32 %s1750, %s1771
  %v1773 = vld [vmem:[%s45] sm:$0xff]
  %v1774 = vld [vmem:[%s45 + $0x8] sm:$0xff]
  %v1775 = vld [vmem:[%s45 + $0x10] sm:$0xff]
  %v1776 = vld [vmem:[%s45 + $0x18] sm:$0xff]
  %v1777 = vld [vmem:[%s45 + $0x20] sm:$0xff]
  %v1778 = vld [vmem:[%s45 + $0x28] sm:$0xff]
  %v1779 = vld [vmem:[%s45 + $0x30] sm:$0xff]
  %v1780 = vld [vmem:[%s45 + $0x38] sm:$0xff]
  %v1781 = vld [vmem:[%s45 + $0x40] sm:$0xff]
  %v1782 = vld [vmem:[%s45 + $0x48] sm:$0xff]
  %v1783 = vld [vmem:[%s45 + $0x50] sm:$0xff]
  %v1784 = vld [vmem:[%s45 + $0x58] sm:$0xff]
  %v1785 = vld [vmem:[%s45 + $0x60] sm:$0xff]
  %v1786 = vld [vmem:[%s45 + $0x68] sm:$0xff]
  %v1787 = vld [vmem:[%s45 + $0x70] sm:$0xff]
  %v1788 = vld [vmem:[%s45 + $0x78] sm:$0xff]
  %v1789 = vld [vmem:[%s47] sm:$0xff]
  %v1790 = vld [vmem:[%s47 + $0x8] sm:$0xff]
  %v1791 = vld [vmem:[%s47 + $0x10] sm:$0xff]
  %v1792 = vld [vmem:[%s47 + $0x18] sm:$0xff]
  %v1793 = vld [vmem:[%s47 + $0x20] sm:$0xff]
  %v1794 = vld [vmem:[%s47 + $0x28] sm:$0xff]
  %v1795 = vld [vmem:[%s47 + $0x30] sm:$0xff]
  %v1796 = vld [vmem:[%s47 + $0x38] sm:$0xff]
  %v1797 = vld [vmem:[%s47 + $0x40] sm:$0xff]
  %v1798 = vld [vmem:[%s47 + $0x48] sm:$0xff]
  %v1799 = vld [vmem:[%s47 + $0x50] sm:$0xff]
  %v1800 = vld [vmem:[%s47 + $0x58] sm:$0xff]
  %v1801 = vld [vmem:[%s47 + $0x60] sm:$0xff]
  %v1802 = vld [vmem:[%s47 + $0x68] sm:$0xff]
  %v1803 = vld [vmem:[%s47 + $0x70] sm:$0xff]
  %v1804 = vld [vmem:[%s47 + $0x78] sm:$0xff]
  %v1805 = vmul.f32 %v1789, 0.5
  %v1806 = vmul.f32 %v1790, 0.5
  %v1807 = vmul.f32 %v1791, 0.5
  %v1808 = vmul.f32 %v1792, 0.5
  %v1809 = vmul.f32 %v1793, 0.5
  %v1810 = vmul.f32 %v1794, 0.5
  %v1811 = vmul.f32 %v1795, 0.5
  %v1812 = vmul.f32 %v1796, 0.5
  %v1813 = vmul.f32 %v1797, 0.5
  %v1814 = vmul.f32 %v1798, 0.5
  %v1815 = vmul.f32 %v1799, 0.5
  %v1816 = vmul.f32 %v1800, 0.5
  %v1817 = vmul.f32 %v1801, 0.5
  %v1818 = vmul.f32 %v1802, 0.5
  %v1819 = vmul.f32 %v1803, 0.5
  %v1820 = vmul.f32 %v1804, 0.5
  %v1821 = vsub.f32 -0.5, %v1805
  %v1822 = vsub.f32 -0.5, %v1806
  %v1823 = vsub.f32 -0.5, %v1807
  %v1824 = vsub.f32 -0.5, %v1808
  %v1825 = vsub.f32 -0.5, %v1809
  %v1826 = vsub.f32 -0.5, %v1810
  %v1827 = vsub.f32 -0.5, %v1811
  %v1828 = vsub.f32 -0.5, %v1812
  %v1829 = vsub.f32 -0.5, %v1813
  %v1830 = vsub.f32 -0.5, %v1814
  %v1831 = vsub.f32 -0.5, %v1815
  %v1832 = vsub.f32 -0.5, %v1816
  %v1833 = vsub.f32 -0.5, %v1817
  %v1834 = vsub.f32 -0.5, %v1818
  %v1835 = vsub.f32 -0.5, %v1819
  %v1836 = vsub.f32 -0.5, %v1820
  %v1837 = vmul.f32 %v1773, 0.5
  %v1838 = vmul.f32 %v1774, 0.5
  %v1839 = vmul.f32 %v1775, 0.5
  %v1840 = vmul.f32 %v1776, 0.5
  %v1841 = vmul.f32 %v1777, 0.5
  %v1842 = vmul.f32 %v1778, 0.5
  %v1843 = vmul.f32 %v1779, 0.5
  %v1844 = vmul.f32 %v1780, 0.5
  %v1845 = vmul.f32 %v1781, 0.5
  %v1846 = vmul.f32 %v1782, 0.5
  %v1847 = vmul.f32 %v1783, 0.5
  %v1848 = vmul.f32 %v1784, 0.5
  %v1849 = vmul.f32 %v1785, 0.5
  %v1850 = vmul.f32 %v1786, 0.5
  %v1851 = vmul.f32 %v1787, 0.5
  %v1852 = vmul.f32 %v1788, 0.5
  %v1853 = vmul.f32 %v1837, %v1773
  %v1854 = vmul.f32 %v1838, %v1774
  %v1855 = vmul.f32 %v1839, %v1775
  %v1856 = vmul.f32 %v1840, %v1776
  %v1857 = vmul.f32 %v1841, %v1777
  %v1858 = vmul.f32 %v1842, %v1778
  %v1859 = vmul.f32 %v1843, %v1779
  %v1860 = vmul.f32 %v1844, %v1780
  %v1861 = vmul.f32 %v1845, %v1781
  %v1862 = vmul.f32 %v1846, %v1782
  %v1863 = vmul.f32 %v1847, %v1783
  %v1864 = vmul.f32 %v1848, %v1784
  %v1865 = vmul.f32 %v1849, %v1785
  %v1866 = vmul.f32 %v1850, %v1786
  %v1867 = vmul.f32 %v1851, %v1787
  %v1868 = vmul.f32 %v1852, %v1788
  %v1869 = vadd.f32 %v1821, %v1853
  %v1870 = vadd.f32 %v1822, %v1854
  %v1871 = vadd.f32 %v1823, %v1855
  %v1872 = vadd.f32 %v1824, %v1856
  %v1873 = vadd.f32 %v1825, %v1857
  %v1874 = vadd.f32 %v1826, %v1858
  %v1875 = vadd.f32 %v1827, %v1859
  %v1876 = vadd.f32 %v1828, %v1860
  %v1877 = vadd.f32 %v1829, %v1861
  %v1878 = vadd.f32 %v1830, %v1862
  %v1879 = vadd.f32 %v1831, %v1863
  %v1880 = vadd.f32 %v1832, %v1864
  %v1881 = vadd.f32 %v1833, %v1865
  %v1882 = vadd.f32 %v1834, %v1866
  %v1883 = vadd.f32 %v1835, %v1867
  %v1884 = vadd.f32 %v1836, %v1868
  %v1885 = vmul.f32 %v1789, 1.442695
  %v1886 = vpow.pop %v1885
  %v1887 = vmul.f32 %v1790, 1.442695
  %v1888 = vpow.pop %v1887
  %v1889 = vmul.f32 %v1791, 1.442695
  %v1890 = vpow.pop %v1889
  %v1891 = vmul.f32 %v1792, 1.442695
  %v1892 = vpow.pop %v1891
  %v1893 = vmul.f32 %v1793, 1.442695
  %v1894 = vpow.pop %v1893
  %v1895 = vmul.f32 %v1794, 1.442695
  %v1896 = vpow.pop %v1895
  %v1897 = vmul.f32 %v1795, 1.442695
  %v1898 = vpow.pop %v1897
  %v1899 = vmul.f32 %v1796, 1.442695
  %v1900 = vpow.pop %v1899
  %v1901 = vmul.f32 %v1797, 1.442695
  %v1902 = vpow.pop %v1901
  %v1903 = vmul.f32 %v1798, 1.442695
  %v1904 = vpow.pop %v1903
  %v1905 = vmul.f32 %v1799, 1.442695
  %v1906 = vpow.pop %v1905
  %v1907 = vmul.f32 %v1800, 1.442695
  %v1908 = vpow.pop %v1907
  %v1909 = vmul.f32 %v1801, 1.442695
  %v1910 = vpow.pop %v1909
  %v1911 = vmul.f32 %v1802, 1.442695
  %v1912 = vpow.pop %v1911
  %v1913 = vmul.f32 %v1803, 1.442695
  %v1914 = vpow.pop %v1913
  %v1915 = vmul.f32 %v1804, 1.442695
  %v1916 = vpow.pop %v1915
  %v1917 = vmul.f32 %v1886, 0.5
  %v1918 = vmul.f32 %v1888, 0.5
  %v1919 = vmul.f32 %v1890, 0.5
  %v1920 = vmul.f32 %v1892, 0.5
  %v1921 = vmul.f32 %v1894, 0.5
  %v1922 = vmul.f32 %v1896, 0.5
  %v1923 = vmul.f32 %v1898, 0.5
  %v1924 = vmul.f32 %v1900, 0.5
  %v1925 = vmul.f32 %v1902, 0.5
  %v1926 = vmul.f32 %v1904, 0.5
  %v1927 = vmul.f32 %v1906, 0.5
  %v1928 = vmul.f32 %v1908, 0.5
  %v1929 = vmul.f32 %v1910, 0.5
  %v1930 = vmul.f32 %v1912, 0.5
  %v1931 = vmul.f32 %v1914, 0.5
  %v1932 = vmul.f32 %v1916, 0.5
  %v1933 = vadd.f32 %v1869, %v1917
  %v1934 = vadd.f32 %v1870, %v1918
  %v1935 = vadd.f32 %v1871, %v1919
  %v1936 = vadd.f32 %v1872, %v1920
  %v1937 = vadd.f32 %v1873, %v1921
  %v1938 = vadd.f32 %v1874, %v1922
  %v1939 = vadd.f32 %v1875, %v1923
  %v1940 = vadd.f32 %v1876, %v1924
  %v1941 = vadd.f32 %v1877, %v1925
  %v1942 = vadd.f32 %v1878, %v1926
  %v1943 = vadd.f32 %v1879, %v1927
  %v1944 = vadd.f32 %v1880, %v1928
  %v1945 = vadd.f32 %v1881, %v1929
  %v1946 = vadd.f32 %v1882, %v1930
  %v1947 = vadd.f32 %v1883, %v1931
  %v1948 = vadd.f32 %v1884, %v1932
  %v1949 = vadd.f32 %v1933, %v1934
  %v1950 = vadd.f32 %v1949, %v1935
  %v1951 = vadd.f32 %v1950, %v1936
  %v1952 = vadd.f32 %v1951, %v1937
  %v1953 = vadd.f32 %v1952, %v1938
  %v1954 = vadd.f32 %v1953, %v1939
  %v1955 = vadd.f32 %v1954, %v1940
  %v1956 = vadd.f32 %v1955, %v1941
  %v1957 = vadd.f32 %v1956, %v1942
  %v1958 = vadd.f32 %v1957, %v1943
  %v1959 = vadd.f32 %v1958, %v1944
  %v1960 = vadd.f32 %v1959, %v1945
  %v1961 = vadd.f32 %v1960, %v1946
  %v1962 = vadd.f32 %v1961, %v1947
  %v1963 = vadd.f32 %v1962, %v1948
  %1964 = vadd.xlane.f32.xlu0 %v1963
  %v1965 = vpop.xlane.xlu0 %1964
  %v1966 = vrot.slane %v1965, 4
  %v1967 = vadd.f32 %v1965, %v1966
  %v1968 = vrot.slane %v1967, 2
  %v1969 = vadd.f32 %v1967, %v1968
  %v1970 = vrot.slane %v1969, 1
  %v1971 = vadd.f32 %v1969, %v1970
  %s1972 = vtos %v1971
  %s1973 = sadd.f32 %s1772, %s1972
  %v1974 = vld [vmem:[%s51] sm:$0x3]
  %v1975 = vld [vmem:[%s53] sm:$0x3]
  %v1976 = vmul.f32 %v1975, 0.5
  %v1977 = vsub.f32 -0.5, %v1976
  %v1978 = vmul.f32 %v1974, 0.5
  %v1979 = vmul.f32 %v1978, %v1974
  %v1980 = vadd.f32 %v1977, %v1979
  %v1981 = vmul.f32 %v1975, 1.442695
  %v1982 = vpow.pop %v1981
  %v1983 = vmul.f32 %v1982, 0.5
  %v1984 = vadd.f32 %v1980, %v1983
  %v1986 = vlaneseq
  %v1987 = vshrl.u32 %v1986, 7
  %v1988 = vsub.s32 0, %v1987
  %v1989 = vrot.slane %v1984, %v1988
  %v1990 = vlaneseq
  %v1991 = vshrl.u32 %v1990, 7
  %v1992 = vsub.s32 1, %v1991
  %v1993 = vrot.slane %v1984, %v1992
  %vm1996 = vcmask 1040384
  %v1997 = vsel %vm1996, %v1989, 0.0
  %v1998 = vsel %vm1996, %v1993, 0.0
  %v1999 = vadd.f32 %v1997, %v1998
  %2000 = vadd.xlane.f32.xlu0 %v1999
  %v2001 = vpop.xlane.xlu0 %2000
  %v2002 = vrot.slane %v2001, 4
  %v2003 = vadd.f32 %v2001, %v2002
  %v2004 = vrot.slane %v2003, 2
  %v2005 = vadd.f32 %v2003, %v2004
  %v2006 = vrot.slane %v2005, 1
  %v2007 = vadd.f32 %v2005, %v2006
  %s2008 = vtos %v2007
  %s2009 = sadd.f32 %s1973, %s2008
  %v2010 = vlaneseq
  %v2011 = vshrl.u32 %v2010, 7
  %v2012 = vlaneseq
  %v2013 = vand.u32 %v2012, 127
  %vm2014 = vcmask 7168
  %v2015 = vsel %vm2014, %v1579, 0.0
  %v2016 = vsel %vm2014, %v1580, 0.0
  %v2017 = vadd.f32 %v2015, %v2016
  %2018 = vadd.xlane.f32.xlu0 %v2017
  %v2019 = vpop.xlane.xlu0 %2018
  %v2020 = vrot.slane %v2019, 4
  %v2021 = vadd.f32 %v2019, %v2020
  %v2022 = vrot.slane %v2021, 2
  %v2023 = vadd.f32 %v2021, %v2022
  %v2024 = vrot.slane %v2023, 1
  %v2025 = vadd.f32 %v2023, %v2024
  %s2026 = vtos %v2025
  %v2027 = vsel %vm2014, %v594, 0.0
  %v2028 = vsel %vm2014, %v597, 0.0
  %v2029 = vadd.f32 %v2027, %v2028
  %2030 = vadd.xlane.f32.xlu0 %v2029
  %v2031 = vpop.xlane.xlu0 %2030
  %v2032 = vrot.slane %v2031, 4
  %v2033 = vadd.f32 %v2031, %v2032
  %v2034 = vrot.slane %v2033, 2
  %v2035 = vadd.f32 %v2033, %v2034
  %v2036 = vrot.slane %v2035, 1
  %v2037 = vadd.f32 %v2035, %v2036
  %s2038 = vtos %v2037
  %v2039 = vsel %vm2014, %v1560, 0.0
  %v2040 = vsel %vm2014, %v1561, 0.0
  %v2041 = vadd.f32 %v2039, %v2040
  %2042 = vadd.xlane.f32.xlu0 %v2041
  %v2043 = vpop.xlane.xlu0 %2042
  %v2044 = vrot.slane %v2043, 4
  %v2045 = vadd.f32 %v2043, %v2044
  %v2046 = vrot.slane %v2045, 2
  %v2047 = vadd.f32 %v2045, %v2046
  %v2048 = vrot.slane %v2047, 1
  %v2049 = vadd.f32 %v2047, %v2048
  %s2050 = vtos %v2049
  %vm2051 = vcmp.eq.s32.totalorder %v2011, 0
  %vm2052 = vcmp.eq.s32.totalorder %v2013, 0
  %vm2053 = vmand %vm2051, %vm2052
  %v2054 = vstv %s2026
  %v2055 = vsel %vm2053, %v2054, 0.0
  %vm2056 = vcmp.eq.s32.totalorder %v2013, 1
  %vm2057 = vmand %vm2051, %vm2056
  %v2058 = vstv %s2038
  %v2059 = vsel %vm2057, %v2058, %v2055
  %vm2060 = vcmp.eq.s32.totalorder %v2013, 2
  %vm2061 = vmand %vm2051, %vm2060
  %v2062 = vstv %s2050
  %v2063 = vsel %vm2061, %v2062, %v2059
  %vm2064 = vcmp.eq.s32.totalorder %v2013, 3
  %vm2065 = vmand %vm2051, %vm2064
  %v2066 = vstv %s2009
  %v2067 = vsel %vm2065, %v2066, %v2063
  %2068 = vst [vmem:[%s61] sm:$0xff] %v2067
  // Predicated region
  $region118: #{vae_forward.3} parent=0 // pred_check
    _
  $region119: #{vae_forward.3} parent=0 // pred_check_branch
    %2070 = sbr.rel (0) target = $region121
  $region120: #{vae_forward.3} parent=0 // pred_region
    _
  $region121: #{vae_forward.3} parent=0 // pred_fallthru
    _
  // Predicated region
  $region122: #{vae_forward.3} parent=0 // pred_check
    _
  $region123: #{vae_forward.3} parent=0 // pred_check_branch
    %2072 = sbr.rel (0) target = $region125
  $region124: #{vae_forward.3} parent=0 // pred_region
    _
  $region125: #{vae_forward.3} parent=0 // pred_fallthru
    _
  // Predicated region
  $region126: #{vae_forward.3} parent=0 // pred_check
    _
  $region127: #{vae_forward.3} parent=0 // pred_check_branch
    %2074 = sbr.rel (0) target = $region129
  $region128: #{vae_forward.3} parent=0 // pred_region
    _
  $region129: #{vae_forward.3} parent=0 // pred_fallthru
    _
  // Predicated region
  $region130: #{vae_forward.3} parent=0 // pred_check
    _
  $region131: #{vae_forward.3} parent=0 // pred_check_branch
    %2076 = sbr.rel (0) target = $region133
  $region132: #{vae_forward.3} parent=0 // pred_region
    _
  $region133: #{vae_forward.3} parent=0 // pred_fallthru
    _

</llo_original>
